<compile_context>
chip_gen: v6e
topology: v6e:2x2x1
jax: 0.10.0
libtpu: 0.0.40
codegen_flags: <defaults>
</compile_context>

<pallas_src>
import jax
import jax.numpy as jnp
from jax import lax
from jax.experimental import pallas as pl
from jax.experimental.pallas import tpu as pltpu  # noqa: F401  (TPU backend)
import numpy as np

N_V = 200
LAYER_DIMS = [(200, 100), (100, 50), (50, 20), (20, 20), (20, 20)]
PAD = 128  # lane-dense feature width used inside the fused kernel


# ----------------------------------------------------------------------------
# Fused kernel: normalize adjacency once (VMEM-resident), then 5x
#   H <- relu( A_hat @ (H @ W) + b )
# ----------------------------------------------------------------------------
def _fused_gcn_kernel(a_ref, h0_ref,
                      w1_ref, b1_ref, w2_ref, b2_ref, w3_ref, b3_ref,
                      w4_ref, b4_ref, w5_ref, b5_ref,
                      out_ref):
    n = a_ref.shape[0]
    a = a_ref[...]

    # A_hat = D^{-1/2} (A + I) D^{-1/2}, built once, never written to HBM.
    row = lax.broadcasted_iota(jnp.int32, (n, n), 0)
    col = lax.broadcasted_iota(jnp.int32, (n, n), 1)
    a_tilde = a + (row == col).astype(a.dtype)
    colsum = jnp.sum(a_tilde, axis=0, keepdims=True)   # (1, n), matches torch .sum(dim=0)
    d_inv_sqrt = lax.rsqrt(colsum)                     # EUP rsqrt; degree >= 1 -> safe
    ahat = d_inv_sqrt.T * a_tilde * d_inv_sqrt         # (n, n)

    # 5 layers, fully unrolled; H stays resident on-chip between layers.
    h = h0_ref[...]
    for w_ref, b_ref in ((w1_ref, b1_ref), (w2_ref, b2_ref), (w3_ref, b3_ref),
                         (w4_ref, b4_ref), (w5_ref, b5_ref)):
        hw = jnp.dot(h, w_ref[...], preferred_element_type=jnp.float32)      # (n, 128)
        y = jnp.dot(ahat, hw, preferred_element_type=jnp.float32) + b_ref[...]
        h = jnp.maximum(y, 0.0)

    out_ref[...] = h  # (n, 128), lane-dense store; sliced to 20 cols outside


# ----------------------------------------------------------------------------
# Wrapper: pad weights/biases to 128 lanes, single pallas_call, slice output.
# ----------------------------------------------------------------------------
def _pad_params(params):
    padded = []
    for (fin, fout), (w, b) in zip(LAYER_DIMS, params):
        fin_pad = fin if fin == N_V else PAD
        wp = jnp.zeros((fin_pad, PAD), jnp.float32).at[:fin, :fout].set(w)
        bp = jnp.zeros((1, PAD), jnp.float32).at[:, :fout].set(b)
        padded.append((wp, bp))
    return padded


@jax.jit
def mymodel3_forward(a, h0, params):
    n = a.shape[0]
    padded = _pad_params(params)

    flat_args = [a, h0]
    in_specs = [pl.BlockSpec(a.shape, lambda: (0, 0)),
                pl.BlockSpec(h0.shape, lambda: (0, 0))]
    for wp, bp in padded:
        flat_args += [wp, bp]
        in_specs.append(pl.BlockSpec(wp.shape, lambda: (0, 0)))
        in_specs.append(pl.BlockSpec(bp.shape, lambda: (0, 0)))

    out_pad = pl.pallas_call(
        _fused_gcn_kernel,
        out_shape=jax.ShapeDtypeStruct((n, PAD), jnp.float32),
        in_specs=in_specs,
        out_specs=pl.BlockSpec((n, PAD), lambda: (0, 0)),
    )(*flat_args)

    return out_pad[:, :LAYER_DIMS[-1][1]]   # (200, 20)


# ----------------------------------------------------------------------------
# Deterministic params + pure-JAX reference
# ----------------------------------------------------------------------------
def init_params(key):
    """nn.Linear-style init: U(-1/sqrt(fan_in), 1/sqrt(fan_in)), deterministic."""
    params = []
    for (fin, fout) in LAYER_DIMS:
        key, kw, kb = jax.random.split(key, 3)
        bound = 1.0 / np.sqrt(fin)
        w = jax.random.uniform(kw, (fin, fout), jnp.float32, -bound, bound)
        b = jax.random.uniform(kb, (1, fout), jnp.float32, -bound, bound)
        params.append((w, b))
    return params


def reference_forward(a, h0, params):
    n = a.shape[0]
    a_tilde = a + jnp.eye(n, dtype=a.dtype)
    d = 1.0 / jnp.sqrt(jnp.sum(a_tilde, axis=0))
    ahat = d[:, None] * a_tilde * d[None, :]
    x = h0
    for (w, b) in params:
        x = jnp.maximum(ahat @ x @ w + b, 0.0)
    return x


if __name__ == "__main__":
    n_V = N_V

    key = jax.random.PRNGKey(0)
    key, ka = jax.random.split(key)

    # deterministic synthetic symmetric binary adjacency (no self loops)
    a_raw = (jax.random.uniform(ka, (n_V, n_V)) < 0.05).astype(jnp.float32)
    A = jnp.maximum(a_raw, a_raw.T) * (1.0 - jnp.eye(n_V, dtype=jnp.float32))

    # h0 = identity features, as in the original script (H = torch.eye(n_V))
    H0 = jnp.eye(n_V, dtype=jnp.float32)

    params = init_params(key)

    out = jax.block_until_ready(mymodel3_forward(A, H0, params))

    ref = reference_forward(A, H0, params)
    np.testing.assert_allclose(np.asarray(out), np.asarray(ref), rtol=1e-4, atol=1e-4)
    assert out.shape == (n_V, 20)

    print("KERNEL_OK")
</pallas_src>

<mosaic_0001>
module attributes {stable_mosaic.version = 11 : i64} {
  func.func @_fused_gcn_kernel(%arg0: memref<200x200xf32, #tpu.memory_space<vmem>>, %arg1: memref<200x200xf32, #tpu.memory_space<vmem>>, %arg2: memref<200x128xf32, #tpu.memory_space<vmem>>, %arg3: memref<1x128xf32, #tpu.memory_space<vmem>>, %arg4: memref<128x128xf32, #tpu.memory_space<vmem>>, %arg5: memref<1x128xf32, #tpu.memory_space<vmem>>, %arg6: memref<128x128xf32, #tpu.memory_space<vmem>>, %arg7: memref<1x128xf32, #tpu.memory_space<vmem>>, %arg8: memref<128x128xf32, #tpu.memory_space<vmem>>, %arg9: memref<1x128xf32, #tpu.memory_space<vmem>>, %arg10: memref<128x128xf32, #tpu.memory_space<vmem>>, %arg11: memref<1x128xf32, #tpu.memory_space<vmem>>, %arg12: memref<200x128xf32, #tpu.memory_space<vmem>>) attributes {dimension_semantics = [], scalar_prefetch = 0 : i64, scratch_operands = 0 : i64, tpu.core_type = #tpu.core_type<tc>} {
    %c0 = arith.constant 0 : index
    %c0_0 = arith.constant 0 : index
    %0 = vector.load %arg0[%c0, %c0_0] : memref<200x200xf32, #tpu.memory_space<vmem>>, vector<200x200xf32>
    %1 = tpu.iota {dimensions = array<i32: 0>} : vector<200x200xi32>
    %2 = tpu.iota {dimensions = array<i32: 1>} : vector<200x200xi32>
    %3 = arith.cmpi eq, %1, %2 : vector<200x200xi32>
    %4 = arith.extui %3 : vector<200x200xi1> to vector<200x200xi32>
    %5 = arith.sitofp %4 : vector<200x200xi32> to vector<200x200xf32>
    %6 = arith.addf %0, %5 : vector<200x200xf32>
    %cst = arith.constant dense<0.000000e+00> : vector<200xf32>
    %7 = vector.multi_reduction <add>, %6, %cst [0] : vector<200x200xf32> to vector<200xf32>
    %8 = vector.shape_cast %7 : vector<200xf32> to vector<1x200xf32>
    %9 = math.rsqrt %8 : vector<1x200xf32>
    %10 = tpu.transpose %9, [1, 0] : vector<1x200xf32> -> vector<200x1xf32>
    %11 = vector.broadcast %10 : vector<200x1xf32> to vector<200x200xf32>
    %12 = arith.mulf %11, %6 : vector<200x200xf32>
    %13 = vector.broadcast %9 : vector<1x200xf32> to vector<200x200xf32>
    %14 = arith.mulf %12, %13 : vector<200x200xf32>
    %c0_1 = arith.constant 0 : index
    %c0_2 = arith.constant 0 : index
    %15 = vector.load %arg1[%c0_1, %c0_2] : memref<200x200xf32, #tpu.memory_space<vmem>>, vector<200x200xf32>
    %c0_3 = arith.constant 0 : index
    %c0_4 = arith.constant 0 : index
    %16 = vector.load %arg2[%c0_3, %c0_4] : memref<200x128xf32, #tpu.memory_space<vmem>>, vector<200x128xf32>
    %cst_5 = arith.constant dense<0.000000e+00> : vector<200x128xf32>
    %17 = tpu.matmul %15, %16, %cst_5 {dimension_numbers = #tpu.dot_dimension_numbers<[1], [0], [0], [1], [0, 0, 1, 1], [], []>} : vector<200x200xf32>, vector<200x128xf32>, vector<200x128xf32> -> vector<200x128xf32>
    %cst_6 = arith.constant dense<0.000000e+00> : vector<200x128xf32>
    %18 = tpu.matmul %14, %17, %cst_6 {dimension_numbers = #tpu.dot_dimension_numbers<[1], [0], [0], [1], [0, 0, 1, 1], [], []>} : vector<200x200xf32>, vector<200x128xf32>, vector<200x128xf32> -> vector<200x128xf32>
    %c0_7 = arith.constant 0 : index
    %c0_8 = arith.constant 0 : index
    %19 = vector.load %arg3[%c0_7, %c0_8] : memref<1x128xf32, #tpu.memory_space<vmem>>, vector<1x128xf32>
    %20 = vector.broadcast %19 : vector<1x128xf32> to vector<200x128xf32>
    %21 = arith.addf %18, %20 : vector<200x128xf32>
    %cst_9 = arith.constant 0.000000e+00 : f32
    %22 = vector.broadcast %cst_9 : f32 to vector<200x128xf32>
    %23 = arith.maximumf %21, %22 : vector<200x128xf32>
    %c0_10 = arith.constant 0 : index
    %c0_11 = arith.constant 0 : index
    %24 = vector.load %arg4[%c0_10, %c0_11] : memref<128x128xf32, #tpu.memory_space<vmem>>, vector<128x128xf32>
    %cst_12 = arith.constant dense<0.000000e+00> : vector<200x128xf32>
    %25 = tpu.matmul %23, %24, %cst_12 {dimension_numbers = #tpu.dot_dimension_numbers<[1], [0], [0], [1], [0, 0, 1, 1], [], []>} : vector<200x128xf32>, vector<128x128xf32>, vector<200x128xf32> -> vector<200x128xf32>
    %cst_13 = arith.constant dense<0.000000e+00> : vector<200x128xf32>
    %26 = tpu.matmul %14, %25, %cst_13 {dimension_numbers = #tpu.dot_dimension_numbers<[1], [0], [0], [1], [0, 0, 1, 1], [], []>} : vector<200x200xf32>, vector<200x128xf32>, vector<200x128xf32> -> vector<200x128xf32>
    %c0_14 = arith.constant 0 : index
    %c0_15 = arith.constant 0 : index
    %27 = vector.load %arg5[%c0_14, %c0_15] : memref<1x128xf32, #tpu.memory_space<vmem>>, vector<1x128xf32>
    %28 = vector.broadcast %27 : vector<1x128xf32> to vector<200x128xf32>
    %29 = arith.addf %26, %28 : vector<200x128xf32>
    %cst_16 = arith.constant 0.000000e+00 : f32
    %30 = vector.broadcast %cst_16 : f32 to vector<200x128xf32>
    %31 = arith.maximumf %29, %30 : vector<200x128xf32>
    %c0_17 = arith.constant 0 : index
    %c0_18 = arith.constant 0 : index
    %32 = vector.load %arg6[%c0_17, %c0_18] : memref<128x128xf32, #tpu.memory_space<vmem>>, vector<128x128xf32>
    %cst_19 = arith.constant dense<0.000000e+00> : vector<200x128xf32>
    %33 = tpu.matmul %31, %32, %cst_19 {dimension_numbers = #tpu.dot_dimension_numbers<[1], [0], [0], [1], [0, 0, 1, 1], [], []>} : vector<200x128xf32>, vector<128x128xf32>, vector<200x128xf32> -> vector<200x128xf32>
    %cst_20 = arith.constant dense<0.000000e+00> : vector<200x128xf32>
    %34 = tpu.matmul %14, %33, %cst_20 {dimension_numbers = #tpu.dot_dimension_numbers<[1], [0], [0], [1], [0, 0, 1, 1], [], []>} : vector<200x200xf32>, vector<200x128xf32>, vector<200x128xf32> -> vector<200x128xf32>
    %c0_21 = arith.constant 0 : index
    %c0_22 = arith.constant 0 : index
    %35 = vector.load %arg7[%c0_21, %c0_22] : memref<1x128xf32, #tpu.memory_space<vmem>>, vector<1x128xf32>
    %36 = vector.broadcast %35 : vector<1x128xf32> to vector<200x128xf32>
    %37 = arith.addf %34, %36 : vector<200x128xf32>
    %cst_23 = arith.constant 0.000000e+00 : f32
    %38 = vector.broadcast %cst_23 : f32 to vector<200x128xf32>
    %39 = arith.maximumf %37, %38 : vector<200x128xf32>
    %c0_24 = arith.constant 0 : index
    %c0_25 = arith.constant 0 : index
    %40 = vector.load %arg8[%c0_24, %c0_25] : memref<128x128xf32, #tpu.memory_space<vmem>>, vector<128x128xf32>
    %cst_26 = arith.constant dense<0.000000e+00> : vector<200x128xf32>
    %41 = tpu.matmul %39, %40, %cst_26 {dimension_numbers = #tpu.dot_dimension_numbers<[1], [0], [0], [1], [0, 0, 1, 1], [], []>} : vector<200x128xf32>, vector<128x128xf32>, vector<200x128xf32> -> vector<200x128xf32>
    %cst_27 = arith.constant dense<0.000000e+00> : vector<200x128xf32>
    %42 = tpu.matmul %14, %41, %cst_27 {dimension_numbers = #tpu.dot_dimension_numbers<[1], [0], [0], [1], [0, 0, 1, 1], [], []>} : vector<200x200xf32>, vector<200x128xf32>, vector<200x128xf32> -> vector<200x128xf32>
    %c0_28 = arith.constant 0 : index
    %c0_29 = arith.constant 0 : index
    %43 = vector.load %arg9[%c0_28, %c0_29] : memref<1x128xf32, #tpu.memory_space<vmem>>, vector<1x128xf32>
    %44 = vector.broadcast %43 : vector<1x128xf32> to vector<200x128xf32>
    %45 = arith.addf %42, %44 : vector<200x128xf32>
    %cst_30 = arith.constant 0.000000e+00 : f32
    %46 = vector.broadcast %cst_30 : f32 to vector<200x128xf32>
    %47 = arith.maximumf %45, %46 : vector<200x128xf32>
    %c0_31 = arith.constant 0 : index
    %c0_32 = arith.constant 0 : index
    %48 = vector.load %arg10[%c0_31, %c0_32] : memref<128x128xf32, #tpu.memory_space<vmem>>, vector<128x128xf32>
    %cst_33 = arith.constant dense<0.000000e+00> : vector<200x128xf32>
    %49 = tpu.matmul %47, %48, %cst_33 {dimension_numbers = #tpu.dot_dimension_numbers<[1], [0], [0], [1], [0, 0, 1, 1], [], []>} : vector<200x128xf32>, vector<128x128xf32>, vector<200x128xf32> -> vector<200x128xf32>
    %cst_34 = arith.constant dense<0.000000e+00> : vector<200x128xf32>
    %50 = tpu.matmul %14, %49, %cst_34 {dimension_numbers = #tpu.dot_dimension_numbers<[1], [0], [0], [1], [0, 0, 1, 1], [], []>} : vector<200x200xf32>, vector<200x128xf32>, vector<200x128xf32> -> vector<200x128xf32>
    %c0_35 = arith.constant 0 : index
    %c0_36 = arith.constant 0 : index
    %51 = vector.load %arg11[%c0_35, %c0_36] : memref<1x128xf32, #tpu.memory_space<vmem>>, vector<1x128xf32>
    %52 = vector.broadcast %51 : vector<1x128xf32> to vector<200x128xf32>
    %53 = arith.addf %50, %52 : vector<200x128xf32>
    %cst_37 = arith.constant 0.000000e+00 : f32
    %54 = vector.broadcast %cst_37 : f32 to vector<200x128xf32>
    %55 = arith.maximumf %53, %54 : vector<200x128xf32>
    %c0_38 = arith.constant 0 : index
    %c0_39 = arith.constant 0 : index
    %56 = vector.load %arg12[%c0_38, %c0_39] : memref<200x128xf32, #tpu.memory_space<vmem>>, vector<200x128xf32>
    tpu.vector_store %arg12[%c0_38, %c0_39], %55 {strides = array<i32>} : memref<200x128xf32, #tpu.memory_space<vmem>>, vector<200x128xf32>,
    return
  }
}

</mosaic_0001>

<llo_original>
// kernel: mymodel3_forward.1
$region0: #{mymodel3_forward.1}
  #allocation0 [shape = 'u32[]', space=smem, size = 0x4, offset = 0x4, fixed_abs, tag = 'smem constant byte address 0x4 - core index']
  #allocation1 [shape = 'u32[144,128]{1,0:T(1,128)}', space=vmem, size = 0x12000, scoped, tag = 'internal scratch']
  %s0 = inlined_call_operand.vmem [shape: f32[200,200], index: 0, kind: input, shape index: {}]
  %s1 = inlined_call_operand.vmem [shape: f32[200,200], index: 1, kind: input, shape index: {}]
  %s2 = inlined_call_operand.vmem [shape: f32[200,128], index: 2, kind: input, shape index: {}]
  %s3 = inlined_call_operand.vmem [shape: f32[1,128], index: 3, kind: input, shape index: {}]
  %s4 = inlined_call_operand.vmem [shape: f32[128,128], index: 4, kind: input, shape index: {}]
  %s5 = inlined_call_operand.vmem [shape: f32[1,128], index: 5, kind: input, shape index: {}]
  %s6 = inlined_call_operand.vmem [shape: f32[128,128], index: 6, kind: input, shape index: {}]
  %s7 = inlined_call_operand.vmem [shape: f32[1,128], index: 7, kind: input, shape index: {}]
  %s8 = inlined_call_operand.vmem [shape: f32[128,128], index: 8, kind: input, shape index: {}]
  %s9 = inlined_call_operand.vmem [shape: f32[1,128], index: 9, kind: input, shape index: {}]
  %s10 = inlined_call_operand.vmem [shape: f32[128,128], index: 10, kind: input, shape index: {}]
  %s11 = inlined_call_operand.vmem [shape: f32[1,128], index: 11, kind: input, shape index: {}]
  %s12 = inlined_call_operand.vmem [shape: f32[200,128], index: 12, kind: output, shape index: {}]
  %s13 = sld [smem:[#allocation0]]
  $region58: #{mymodel3_forward.1} parent=0
    _
  %s15 = ssub.s32 1, %s13
  %s16 = scalar_select 0, %s15, %s13
  // Predicated region
  $region2: #{mymodel3_forward.1} parent=0 // pred_check
    _
  $region3: #{mymodel3_forward.1} parent=0 // pred_check_branch
    %18 = sbr.rel (0) target = $region5
  $region4: #{mymodel3_forward.1} parent=0 // pred_region
    _
  $region5: #{mymodel3_forward.1} parent=0 // pred_fallthru
    _
  // Predicated region
  $region6: #{mymodel3_forward.1} parent=0 // pred_check
    _
  $region7: #{mymodel3_forward.1} parent=0 // pred_check_branch
    %20 = sbr.rel (0) target = $region9
  $region8: #{mymodel3_forward.1} parent=0 // pred_region
    _
  $region9: #{mymodel3_forward.1} parent=0 // pred_fallthru
    _
  // Predicated region
  $region10: #{mymodel3_forward.1} parent=0 // pred_check
    _
  $region11: #{mymodel3_forward.1} parent=0 // pred_check_branch
    %22 = sbr.rel (0) target = $region13
  $region12: #{mymodel3_forward.1} parent=0 // pred_region
    _
  $region13: #{mymodel3_forward.1} parent=0 // pred_fallthru
    _
  // Predicated region
  $region14: #{mymodel3_forward.1} parent=0 // pred_check
    _
  $region15: #{mymodel3_forward.1} parent=0 // pred_check_branch
    %24 = sbr.rel (0) target = $region17
  $region16: #{mymodel3_forward.1} parent=0 // pred_region
    _
  $region17: #{mymodel3_forward.1} parent=0 // pred_fallthru
    _
  // Predicated region
  $region18: #{mymodel3_forward.1} parent=0 // pred_check
    _
  $region19: #{mymodel3_forward.1} parent=0 // pred_check_branch
    %26 = sbr.rel (0) target = $region21
  $region20: #{mymodel3_forward.1} parent=0 // pred_region
    _
  $region21: #{mymodel3_forward.1} parent=0 // pred_fallthru
    _
  // Predicated region
  $region22: #{mymodel3_forward.1} parent=0 // pred_check
    _
  $region23: #{mymodel3_forward.1} parent=0 // pred_check_branch
    %28 = sbr.rel (0) target = $region25
  $region24: #{mymodel3_forward.1} parent=0 // pred_region
    _
  $region25: #{mymodel3_forward.1} parent=0 // pred_fallthru
    _
  // Predicated region
  $region26: #{mymodel3_forward.1} parent=0 // pred_check
    _
  $region27: #{mymodel3_forward.1} parent=0 // pred_check_branch
    %30 = sbr.rel (0) target = $region29
  $region28: #{mymodel3_forward.1} parent=0 // pred_region
    _
  $region29: #{mymodel3_forward.1} parent=0 // pred_fallthru
    _
  // Predicated region
  $region30: #{mymodel3_forward.1} parent=0 // pred_check
    _
  $region31: #{mymodel3_forward.1} parent=0 // pred_check_branch
    %32 = sbr.rel (0) target = $region33
  $region32: #{mymodel3_forward.1} parent=0 // pred_region
    _
  $region33: #{mymodel3_forward.1} parent=0 // pred_fallthru
    _
  // Predicated region
  $region34: #{mymodel3_forward.1} parent=0 // pred_check
    _
  $region35: #{mymodel3_forward.1} parent=0 // pred_check_branch
    %34 = sbr.rel (0) target = $region37
  $region36: #{mymodel3_forward.1} parent=0 // pred_region
    _
  $region37: #{mymodel3_forward.1} parent=0 // pred_fallthru
    _
  // Predicated region
  $region38: #{mymodel3_forward.1} parent=0 // pred_check
    _
  $region39: #{mymodel3_forward.1} parent=0 // pred_check_branch
    %36 = sbr.rel (0) target = $region41
  $region40: #{mymodel3_forward.1} parent=0 // pred_region
    _
  $region41: #{mymodel3_forward.1} parent=0 // pred_fallthru
    _
  // Predicated region
  $region42: #{mymodel3_forward.1} parent=0 // pred_check
    _
  $region43: #{mymodel3_forward.1} parent=0 // pred_check_branch
    %38 = sbr.rel (0) target = $region45
  $region44: #{mymodel3_forward.1} parent=0 // pred_region
    _
  $region45: #{mymodel3_forward.1} parent=0 // pred_fallthru
    _
  // Predicated region
  $region46: #{mymodel3_forward.1} parent=0 // pred_check
    _
  $region47: #{mymodel3_forward.1} parent=0 // pred_check_branch
    %40 = sbr.rel (0) target = $region49
  $region48: #{mymodel3_forward.1} parent=0 // pred_region
    _
  $region49: #{mymodel3_forward.1} parent=0 // pred_fallthru
    _
  %v41 = vld [vmem:[%s0] sm:$0xff]
  %v42 = vld [vmem:[%s0 + $0x8] sm:$0xff]
  %v43 = vld [vmem:[%s0 + $0x10] sm:$0xff]
  %v44 = vld [vmem:[%s0 + $0x18] sm:$0xff]
  %v45 = vld [vmem:[%s0 + $0x20] sm:$0xff]
  %v46 = vld [vmem:[%s0 + $0x28] sm:$0xff]
  %v47 = vld [vmem:[%s0 + $0x30] sm:$0xff]
  %v48 = vld [vmem:[%s0 + $0x38] sm:$0xff]
  %v49 = vld [vmem:[%s0 + $0x40] sm:$0xff]
  %v50 = vld [vmem:[%s0 + $0x48] sm:$0xff]
  %v51 = vld [vmem:[%s0 + $0x50] sm:$0xff]
  %v52 = vld [vmem:[%s0 + $0x58] sm:$0xff]
  %v53 = vld [vmem:[%s0 + $0x60] sm:$0xff]
  %v54 = vld [vmem:[%s0 + $0x68] sm:$0xff]
  %v55 = vld [vmem:[%s0 + $0x70] sm:$0xff]
  %v56 = vld [vmem:[%s0 + $0x78] sm:$0xff]
  %v57 = vld [vmem:[%s0 + $0x80] sm:$0xff]
  %v58 = vld [vmem:[%s0 + $0x88] sm:$0xff]
  %v59 = vld [vmem:[%s0 + $0x90] sm:$0xff]
  %v60 = vld [vmem:[%s0 + $0x98] sm:$0xff]
  %v61 = vld [vmem:[%s0 + $0xa0] sm:$0xff]
  %v62 = vld [vmem:[%s0 + $0xa8] sm:$0xff]
  %v63 = vld [vmem:[%s0 + $0xb0] sm:$0xff]
  %v64 = vld [vmem:[%s0 + $0xb8] sm:$0xff]
  %v65 = vld [vmem:[%s0 + $0xc0] sm:$0xff]
  %v66 = vld [vmem:[%s0 + $0xc8] sm:$0xff]
  %v67 = vld [vmem:[%s0 + $0xd0] sm:$0xff]
  %v68 = vld [vmem:[%s0 + $0xd8] sm:$0xff]
  %v69 = vld [vmem:[%s0 + $0xe0] sm:$0xff]
  %v70 = vld [vmem:[%s0 + $0xe8] sm:$0xff]
  %v71 = vld [vmem:[%s0 + $0xf0] sm:$0xff]
  %v72 = vld [vmem:[%s0 + $0xf8] sm:$0xff]
  %v73 = vld [vmem:[%s0 + $0x100] sm:$0xff]
  %v74 = vld [vmem:[%s0 + $0x108] sm:$0xff]
  %v75 = vld [vmem:[%s0 + $0x110] sm:$0xff]
  %v76 = vld [vmem:[%s0 + $0x118] sm:$0xff]
  %v77 = vld [vmem:[%s0 + $0x120] sm:$0xff]
  %v78 = vld [vmem:[%s0 + $0x128] sm:$0xff]
  %v79 = vld [vmem:[%s0 + $0x130] sm:$0xff]
  %v80 = vld [vmem:[%s0 + $0x138] sm:$0xff]
  %v81 = vld [vmem:[%s0 + $0x140] sm:$0xff]
  %v82 = vld [vmem:[%s0 + $0x148] sm:$0xff]
  %v83 = vld [vmem:[%s0 + $0x150] sm:$0xff]
  %v84 = vld [vmem:[%s0 + $0x158] sm:$0xff]
  %v85 = vld [vmem:[%s0 + $0x160] sm:$0xff]
  %v86 = vld [vmem:[%s0 + $0x168] sm:$0xff]
  %v87 = vld [vmem:[%s0 + $0x170] sm:$0xff]
  %v88 = vld [vmem:[%s0 + $0x178] sm:$0xff]
  %v89 = vld [vmem:[%s0 + $0x180] sm:$0xff]
  %v90 = vld [vmem:[%s0 + $0x188] sm:$0xff]
  %v91 = vlaneseq
  %v92 = vshrl.u32 %v91, 7
  %v93 = vadd.s32 %v92, 8
  %v94 = vadd.s32 %v92, 16
  %v95 = vadd.s32 %v92, 24
  %v96 = vadd.s32 %v92, 32
  %v97 = vadd.s32 %v92, 40
  %v98 = vadd.s32 %v92, 48
  %v99 = vadd.s32 %v92, 56
  %v100 = vadd.s32 %v92, 64
  %v101 = vadd.s32 %v92, 72
  %v102 = vadd.s32 %v92, 80
  %v103 = vadd.s32 %v92, 88
  %v104 = vadd.s32 %v92, 96
  %v105 = vadd.s32 %v92, 104
  %v106 = vadd.s32 %v92, 112
  %v107 = vadd.s32 %v92, 120
  %v108 = vadd.s32 %v92, 128
  %v109 = vadd.s32 %v92, 136
  %v110 = vadd.s32 %v92, 144
  %v111 = vadd.s32 %v92, 152
  %v112 = vadd.s32 %v92, 160
  %v113 = vadd.s32 %v92, 168
  %v114 = vadd.s32 %v92, 176
  %v115 = vadd.s32 %v92, 184
  %v116 = vadd.s32 %v92, 192
  %v117 = vlaneseq
  %v118 = vand.u32 %v117, 127
  %v119 = vadd.s32 %v118, 128
  %vm120 = vcmp.eq.s32.totalorder %v92, %v118
  %vm121 = vcmp.eq.s32.totalorder %v92, %v119
  %vm122 = vcmp.eq.s32.totalorder %v93, %v118
  %vm123 = vcmp.eq.s32.totalorder %v93, %v119
  %vm124 = vcmp.eq.s32.totalorder %v94, %v118
  %vm125 = vcmp.eq.s32.totalorder %v94, %v119
  %vm126 = vcmp.eq.s32.totalorder %v95, %v118
  %vm127 = vcmp.eq.s32.totalorder %v95, %v119
  %vm128 = vcmp.eq.s32.totalorder %v96, %v118
  %vm129 = vcmp.eq.s32.totalorder %v96, %v119
  %vm130 = vcmp.eq.s32.totalorder %v97, %v118
  %vm131 = vcmp.eq.s32.totalorder %v97, %v119
  %vm132 = vcmp.eq.s32.totalorder %v98, %v118
  %vm133 = vcmp.eq.s32.totalorder %v98, %v119
  %vm134 = vcmp.eq.s32.totalorder %v99, %v118
  %vm135 = vcmp.eq.s32.totalorder %v99, %v119
  %vm136 = vcmp.eq.s32.totalorder %v100, %v118
  %vm137 = vcmp.eq.s32.totalorder %v100, %v119
  %vm138 = vcmp.eq.s32.totalorder %v101, %v118
  %vm139 = vcmp.eq.s32.totalorder %v101, %v119
  %vm140 = vcmp.eq.s32.totalorder %v102, %v118
  %vm141 = vcmp.eq.s32.totalorder %v102, %v119
  %vm142 = vcmp.eq.s32.totalorder %v103, %v118
  %vm143 = vcmp.eq.s32.totalorder %v103, %v119
  %vm144 = vcmp.eq.s32.totalorder %v104, %v118
  %vm145 = vcmp.eq.s32.totalorder %v104, %v119
  %vm146 = vcmp.eq.s32.totalorder %v105, %v118
  %vm147 = vcmp.eq.s32.totalorder %v105, %v119
  %vm148 = vcmp.eq.s32.totalorder %v106, %v118
  %vm149 = vcmp.eq.s32.totalorder %v106, %v119
  %vm150 = vcmp.eq.s32.totalorder %v107, %v118
  %vm151 = vcmp.eq.s32.totalorder %v107, %v119
  %vm152 = vcmp.eq.s32.totalorder %v108, %v118
  %vm153 = vcmp.eq.s32.totalorder %v108, %v119
  %vm154 = vcmp.eq.s32.totalorder %v109, %v118
  %vm155 = vcmp.eq.s32.totalorder %v109, %v119
  %vm156 = vcmp.eq.s32.totalorder %v110, %v118
  %vm157 = vcmp.eq.s32.totalorder %v110, %v119
  %vm158 = vcmp.eq.s32.totalorder %v111, %v118
  %vm159 = vcmp.eq.s32.totalorder %v111, %v119
  %vm160 = vcmp.eq.s32.totalorder %v112, %v118
  %vm161 = vcmp.eq.s32.totalorder %v112, %v119
  %vm162 = vcmp.eq.s32.totalorder %v113, %v118
  %vm163 = vcmp.eq.s32.totalorder %v113, %v119
  %vm164 = vcmp.eq.s32.totalorder %v114, %v118
  %vm165 = vcmp.eq.s32.totalorder %v114, %v119
  %vm166 = vcmp.eq.s32.totalorder %v115, %v118
  %vm167 = vcmp.eq.s32.totalorder %v115, %v119
  %vm168 = vcmp.eq.s32.totalorder %v116, %v118
  %vm169 = vcmp.eq.s32.totalorder %v116, %v119
  %v170 = vsel %vm120, 1, 0
  %v171 = vsel %vm121, 1, 0
  %v172 = vsel %vm122, 1, 0
  %v173 = vsel %vm123, 1, 0
  %v174 = vsel %vm124, 1, 0
  %v175 = vsel %vm125, 1, 0
  %v176 = vsel %vm126, 1, 0
  %v177 = vsel %vm127, 1, 0
  %v178 = vsel %vm128, 1, 0
  %v179 = vsel %vm129, 1, 0
  %v180 = vsel %vm130, 1, 0
  %v181 = vsel %vm131, 1, 0
  %v182 = vsel %vm132, 1, 0
  %v183 = vsel %vm133, 1, 0
  %v184 = vsel %vm134, 1, 0
  %v185 = vsel %vm135, 1, 0
  %v186 = vsel %vm136, 1, 0
  %v187 = vsel %vm137, 1, 0
  %v188 = vsel %vm138, 1, 0
  %v189 = vsel %vm139, 1, 0
  %v190 = vsel %vm140, 1, 0
  %v191 = vsel %vm141, 1, 0
  %v192 = vsel %vm142, 1, 0
  %v193 = vsel %vm143, 1, 0
  %v194 = vsel %vm144, 1, 0
  %v195 = vsel %vm145, 1, 0
  %v196 = vsel %vm146, 1, 0
  %v197 = vsel %vm147, 1, 0
  %v198 = vsel %vm148, 1, 0
  %v199 = vsel %vm149, 1, 0
  %v200 = vsel %vm150, 1, 0
  %v201 = vsel %vm151, 1, 0
  %v202 = vsel %vm152, 1, 0
  %v203 = vsel %vm153, 1, 0
  %v204 = vsel %vm154, 1, 0
  %v205 = vsel %vm155, 1, 0
  %v206 = vsel %vm156, 1, 0
  %v207 = vsel %vm157, 1, 0
  %v208 = vsel %vm158, 1, 0
  %v209 = vsel %vm159, 1, 0
  %v210 = vsel %vm160, 1, 0
  %v211 = vsel %vm161, 1, 0
  %v212 = vsel %vm162, 1, 0
  %v213 = vsel %vm163, 1, 0
  %v214 = vsel %vm164, 1, 0
  %v215 = vsel %vm165, 1, 0
  %v216 = vsel %vm166, 1, 0
  %v217 = vsel %vm167, 1, 0
  %v218 = vsel %vm168, 1, 0
  %v219 = vsel %vm169, 1, 0
  %v220 = vcvt.s32.f32 %v170
  %v221 = vcvt.s32.f32 %v171
  %v222 = vcvt.s32.f32 %v172
  %v223 = vcvt.s32.f32 %v173
  %v224 = vcvt.s32.f32 %v174
  %v225 = vcvt.s32.f32 %v175
  %v226 = vcvt.s32.f32 %v176
  %v227 = vcvt.s32.f32 %v177
  %v228 = vcvt.s32.f32 %v178
  %v229 = vcvt.s32.f32 %v179
  %v230 = vcvt.s32.f32 %v180
  %v231 = vcvt.s32.f32 %v181
  %v232 = vcvt.s32.f32 %v182
  %v233 = vcvt.s32.f32 %v183
  %v234 = vcvt.s32.f32 %v184
  %v235 = vcvt.s32.f32 %v185
  %v236 = vcvt.s32.f32 %v186
  %v237 = vcvt.s32.f32 %v187
  %v238 = vcvt.s32.f32 %v188
  %v239 = vcvt.s32.f32 %v189
  %v240 = vcvt.s32.f32 %v190
  %v241 = vcvt.s32.f32 %v191
  %v242 = vcvt.s32.f32 %v192
  %v243 = vcvt.s32.f32 %v193
  %v244 = vcvt.s32.f32 %v194
  %v245 = vcvt.s32.f32 %v195
  %v246 = vcvt.s32.f32 %v196
  %v247 = vcvt.s32.f32 %v197
  %v248 = vcvt.s32.f32 %v198
  %v249 = vcvt.s32.f32 %v199
  %v250 = vcvt.s32.f32 %v200
  %v251 = vcvt.s32.f32 %v201
  %v252 = vcvt.s32.f32 %v202
  %v253 = vcvt.s32.f32 %v203
  %v254 = vcvt.s32.f32 %v204
  %v255 = vcvt.s32.f32 %v205
  %v256 = vcvt.s32.f32 %v206
  %v257 = vcvt.s32.f32 %v207
  %v258 = vcvt.s32.f32 %v208
  %v259 = vcvt.s32.f32 %v209
  %v260 = vcvt.s32.f32 %v210
  %v261 = vcvt.s32.f32 %v211
  %v262 = vcvt.s32.f32 %v212
  %v263 = vcvt.s32.f32 %v213
  %v264 = vcvt.s32.f32 %v214
  %v265 = vcvt.s32.f32 %v215
  %v266 = vcvt.s32.f32 %v216
  %v267 = vcvt.s32.f32 %v217
  %v268 = vcvt.s32.f32 %v218
  %v269 = vcvt.s32.f32 %v219
  %v270 = vadd.f32 %v41, %v220
  %v271 = vadd.f32 %v42, %v221
  %v272 = vadd.f32 %v43, %v222
  %v273 = vadd.f32 %v44, %v223
  %v274 = vadd.f32 %v45, %v224
  %v275 = vadd.f32 %v46, %v225
  %v276 = vadd.f32 %v47, %v226
  %v277 = vadd.f32 %v48, %v227
  %v278 = vadd.f32 %v49, %v228
  %v279 = vadd.f32 %v50, %v229
  %v280 = vadd.f32 %v51, %v230
  %v281 = vadd.f32 %v52, %v231
  %v282 = vadd.f32 %v53, %v232
  %v283 = vadd.f32 %v54, %v233
  %v284 = vadd.f32 %v55, %v234
  %v285 = vadd.f32 %v56, %v235
  %v286 = vadd.f32 %v57, %v236
  %v287 = vadd.f32 %v58, %v237
  %v288 = vadd.f32 %v59, %v238
  %v289 = vadd.f32 %v60, %v239
  %v290 = vadd.f32 %v61, %v240
  %v291 = vadd.f32 %v62, %v241
  %v292 = vadd.f32 %v63, %v242
  %v293 = vadd.f32 %v64, %v243
  %v294 = vadd.f32 %v65, %v244
  %v295 = vadd.f32 %v66, %v245
  %v296 = vadd.f32 %v67, %v246
  %v297 = vadd.f32 %v68, %v247
  %v298 = vadd.f32 %v69, %v248
  %v299 = vadd.f32 %v70, %v249
  %v300 = vadd.f32 %v71, %v250
  %v301 = vadd.f32 %v72, %v251
  %v302 = vadd.f32 %v73, %v252
  %v303 = vadd.f32 %v74, %v253
  %v304 = vadd.f32 %v75, %v254
  %v305 = vadd.f32 %v76, %v255
  %v306 = vadd.f32 %v77, %v256
  %v307 = vadd.f32 %v78, %v257
  %v308 = vadd.f32 %v79, %v258
  %v309 = vadd.f32 %v80, %v259
  %v310 = vadd.f32 %v81, %v260
  %v311 = vadd.f32 %v82, %v261
  %v312 = vadd.f32 %v83, %v262
  %v313 = vadd.f32 %v84, %v263
  %v314 = vadd.f32 %v85, %v264
  %v315 = vadd.f32 %v86, %v265
  %v316 = vadd.f32 %v87, %v266
  %v317 = vadd.f32 %v88, %v267
  %v318 = vadd.f32 %v89, %v268
  %v319 = vadd.f32 %v90, %v269
  %v320 = vadd.f32 %v270, %v272
  %v321 = vadd.f32 %v320, %v274
  %v322 = vadd.f32 %v321, %v276
  %v323 = vadd.f32 %v322, %v278
  %v324 = vadd.f32 %v323, %v280
  %v325 = vadd.f32 %v324, %v282
  %v326 = vadd.f32 %v325, %v284
  %v327 = vadd.f32 %v326, %v286
  %v328 = vadd.f32 %v327, %v288
  %v329 = vadd.f32 %v328, %v290
  %v330 = vadd.f32 %v329, %v292
  %v331 = vadd.f32 %v330, %v294
  %v332 = vadd.f32 %v331, %v296
  %v333 = vadd.f32 %v332, %v298
  %v334 = vadd.f32 %v333, %v300
  %v335 = vadd.f32 %v334, %v302
  %v336 = vadd.f32 %v335, %v304
  %v337 = vadd.f32 %v336, %v306
  %v338 = vadd.f32 %v337, %v308
  %v339 = vadd.f32 %v338, %v310
  %v340 = vadd.f32 %v339, %v312
  %v341 = vadd.f32 %v340, %v314
  %v342 = vadd.f32 %v341, %v316
  %v343 = vadd.f32 %v342, %v318
  %v344 = vrot.slane %v343, 4
  %v345 = vadd.f32 %v343, %v344
  %v346 = vrot.slane %v345, 2
  %v347 = vadd.f32 %v345, %v346
  %v348 = vrot.slane %v347, 1
  %v349 = vadd.f32 %v347, %v348
  %vm350 = vcmask 588800
  %v351 = vsel %vm350, %v271, 0.0
  %v352 = vsel %vm350, %v273, 0.0
  %v353 = vadd.f32 %v351, %v352
  %v354 = vsel %vm350, %v275, 0.0
  %v355 = vadd.f32 %v353, %v354
  %v356 = vsel %vm350, %v277, 0.0
  %v357 = vadd.f32 %v355, %v356
  %v358 = vsel %vm350, %v279, 0.0
  %v359 = vadd.f32 %v357, %v358
  %v360 = vsel %vm350, %v281, 0.0
  %v361 = vadd.f32 %v359, %v360
  %v362 = vsel %vm350, %v283, 0.0
  %v363 = vadd.f32 %v361, %v362
  %v364 = vsel %vm350, %v285, 0.0
  %v365 = vadd.f32 %v363, %v364
  %v366 = vsel %vm350, %v287, 0.0
  %v367 = vadd.f32 %v365, %v366
  %v368 = vsel %vm350, %v289, 0.0
  %v369 = vadd.f32 %v367, %v368
  %v370 = vsel %vm350, %v291, 0.0
  %v371 = vadd.f32 %v369, %v370
  %v372 = vsel %vm350, %v293, 0.0
  %v373 = vadd.f32 %v371, %v372
  %v374 = vsel %vm350, %v295, 0.0
  %v375 = vadd.f32 %v373, %v374
  %v376 = vsel %vm350, %v297, 0.0
  %v377 = vadd.f32 %v375, %v376
  %v378 = vsel %vm350, %v299, 0.0
  %v379 = vadd.f32 %v377, %v378
  %v380 = vsel %vm350, %v301, 0.0
  %v381 = vadd.f32 %v379, %v380
  %v382 = vsel %vm350, %v303, 0.0
  %v383 = vadd.f32 %v381, %v382
  %v384 = vsel %vm350, %v305, 0.0
  %v385 = vadd.f32 %v383, %v384
  %v386 = vsel %vm350, %v307, 0.0
  %v387 = vadd.f32 %v385, %v386
  %v388 = vsel %vm350, %v309, 0.0
  %v389 = vadd.f32 %v387, %v388
  %v390 = vsel %vm350, %v311, 0.0
  %v391 = vadd.f32 %v389, %v390
  %v392 = vsel %vm350, %v313, 0.0
  %v393 = vadd.f32 %v391, %v392
  %v394 = vsel %vm350, %v315, 0.0
  %v395 = vadd.f32 %v393, %v394
  %v396 = vsel %vm350, %v317, 0.0
  %v397 = vadd.f32 %v395, %v396
  %v398 = vsel %vm350, %v319, 0.0
  %v399 = vadd.f32 %v397, %v398
  %v400 = vrot.slane %v399, 4
  %v401 = vadd.f32 %v399, %v400
  %v402 = vrot.slane %v401, 2
  %v403 = vadd.f32 %v401, %v402
  %v404 = vrot.slane %v403, 1
  %v405 = vadd.f32 %v403, %v404
  %v406 = vrsqrt.pop %v349
  %v407 = vrsqrt.pop %v405
  %408 = vxpose.xlu0.b32.start [1/16] %v406, 128
  %409 = vxpose.xlu0.b32.cont [2/16] 0.0, 128
  %410 = vxpose.xlu0.b32.cont [3/16] 0.0, 128
  %411 = vxpose.xlu0.b32.cont [4/16] 0.0, 128
  %412 = vxpose.xlu0.b32.cont [5/16] 0.0, 128
  %413 = vxpose.xlu0.b32.cont [6/16] 0.0, 128
  %414 = vxpose.xlu0.b32.cont [7/16] 0.0, 128
  %415 = vxpose.xlu0.b32.cont [8/16] 0.0, 128
  %416 = vxpose.xlu0.b32.cont [9/16] 0.0, 128
  %417 = vxpose.xlu0.b32.cont [10/16] 0.0, 128
  %418 = vxpose.xlu0.b32.cont [11/16] 0.0, 128
  %419 = vxpose.xlu0.b32.cont [12/16] 0.0, 128
  %420 = vxpose.xlu0.b32.cont [13/16] 0.0, 128
  %421 = vxpose.xlu0.b32.cont [14/16] 0.0, 128
  %422 = vxpose.xlu0.b32.cont [15/16] 0.0, 128
  %423 = vxpose.xlu0.b32.end [16/16] 0.0, 128
  %v424 = vpop.trf.xlu0
  %v425 = vpop.trf.xlu0
  %v426 = vpop.trf.xlu0
  %v427 = vpop.trf.xlu0
  %v428 = vpop.trf.xlu0
  %v429 = vpop.trf.xlu0
  %v430 = vpop.trf.xlu0
  %v431 = vpop.trf.xlu0
  %v432 = vpop.trf.xlu0
  %v433 = vpop.trf.xlu0
  %v434 = vpop.trf.xlu0
  %v435 = vpop.trf.xlu0
  %v436 = vpop.trf.xlu0
  %v437 = vpop.trf.xlu0
  %v438 = vpop.trf.xlu0
  %v439 = vpop.trf.xlu0
  %440 = vxpose.xlu0.b32.start [1/16] %v407, 128
  %441 = vxpose.xlu0.b32.cont [2/16] 0.0, 128
  %442 = vxpose.xlu0.b32.cont [3/16] 0.0, 128
  %443 = vxpose.xlu0.b32.cont [4/16] 0.0, 128
  %444 = vxpose.xlu0.b32.cont [5/16] 0.0, 128
  %445 = vxpose.xlu0.b32.cont [6/16] 0.0, 128
  %446 = vxpose.xlu0.b32.cont [7/16] 0.0, 128
  %447 = vxpose.xlu0.b32.cont [8/16] 0.0, 128
  %448 = vxpose.xlu0.b32.cont [9/16] 0.0, 128
  %449 = vxpose.xlu0.b32.cont [10/16] 0.0, 128
  %450 = vxpose.xlu0.b32.cont [11/16] 0.0, 128
  %451 = vxpose.xlu0.b32.cont [12/16] 0.0, 128
  %452 = vxpose.xlu0.b32.cont [13/16] 0.0, 128
  %453 = vxpose.xlu0.b32.cont [14/16] 0.0, 128
  %454 = vxpose.xlu0.b32.cont [15/16] 0.0, 128
  %455 = vxpose.xlu0.b32.end [16/16] 0.0, 128
  %v456 = vpop.trf.xlu0
  %v457 = vpop.trf.xlu0
  %v458 = vpop.trf.xlu0
  %v459 = vpop.trf.xlu0
  %v460 = vpop.trf.xlu0
  %v461 = vpop.trf.xlu0
  %v462 = vpop.trf.xlu0
  %v463 = vpop.trf.xlu0
  %v464 = vpop.trf.xlu0
  %v465 = vpop.trf.xlu0
  %v466 = vpop.trf.xlu0
  %v467 = vpop.trf.xlu0
  %v468 = vpop.trf.xlu0
  %v469 = vpop.trf.xlu0
  %v470 = vpop.trf.xlu0
  %v471 = vpop.trf.xlu0
  %473 = vset.pattern.permute.xlu0 0
  %474 = vperm.xlu0 %473, %v424
  %v475 = vpop.permute.xlu0 %474
  %478 = vset.pattern.permute.xlu0 0
  %479 = vperm.xlu0 %478, %v425
  %v480 = vpop.permute.xlu0 %479
  %483 = vset.pattern.permute.xlu0 0
  %484 = vperm.xlu0 %483, %v426
  %v485 = vpop.permute.xlu0 %484
  %488 = vset.pattern.permute.xlu0 0
  %489 = vperm.xlu0 %488, %v427
  %v490 = vpop.permute.xlu0 %489
  %493 = vset.pattern.permute.xlu0 0
  %494 = vperm.xlu0 %493, %v428
  %v495 = vpop.permute.xlu0 %494
  %498 = vset.pattern.permute.xlu0 0
  %499 = vperm.xlu0 %498, %v429
  %v500 = vpop.permute.xlu0 %499
  %503 = vset.pattern.permute.xlu0 0
  %504 = vperm.xlu0 %503, %v430
  %v505 = vpop.permute.xlu0 %504
  %508 = vset.pattern.permute.xlu0 0
  %509 = vperm.xlu0 %508, %v431
  %v510 = vpop.permute.xlu0 %509
  %513 = vset.pattern.permute.xlu0 0
  %514 = vperm.xlu0 %513, %v432
  %v515 = vpop.permute.xlu0 %514
  %518 = vset.pattern.permute.xlu0 0
  %519 = vperm.xlu0 %518, %v433
  %v520 = vpop.permute.xlu0 %519
  %523 = vset.pattern.permute.xlu0 0
  %524 = vperm.xlu0 %523, %v434
  %v525 = vpop.permute.xlu0 %524
  %528 = vset.pattern.permute.xlu0 0
  %529 = vperm.xlu0 %528, %v435
  %v530 = vpop.permute.xlu0 %529
  %533 = vset.pattern.permute.xlu0 0
  %534 = vperm.xlu0 %533, %v436
  %v535 = vpop.permute.xlu0 %534
  %538 = vset.pattern.permute.xlu0 0
  %539 = vperm.xlu0 %538, %v437
  %v540 = vpop.permute.xlu0 %539
  %543 = vset.pattern.permute.xlu0 0
  %544 = vperm.xlu0 %543, %v438
  %v545 = vpop.permute.xlu0 %544
  %548 = vset.pattern.permute.xlu0 0
  %549 = vperm.xlu0 %548, %v439
  %v550 = vpop.permute.xlu0 %549
  %553 = vset.pattern.permute.xlu0 0
  %554 = vperm.xlu0 %553, %v456
  %v555 = vpop.permute.xlu0 %554
  %558 = vset.pattern.permute.xlu0 0
  %559 = vperm.xlu0 %558, %v457
  %v560 = vpop.permute.xlu0 %559
  %563 = vset.pattern.permute.xlu0 0
  %564 = vperm.xlu0 %563, %v458
  %v565 = vpop.permute.xlu0 %564
  %568 = vset.pattern.permute.xlu0 0
  %569 = vperm.xlu0 %568, %v459
  %v570 = vpop.permute.xlu0 %569
  %573 = vset.pattern.permute.xlu0 0
  %574 = vperm.xlu0 %573, %v460
  %v575 = vpop.permute.xlu0 %574
  %578 = vset.pattern.permute.xlu0 0
  %579 = vperm.xlu0 %578, %v461
  %v580 = vpop.permute.xlu0 %579
  %583 = vset.pattern.permute.xlu0 0
  %584 = vperm.xlu0 %583, %v462
  %v585 = vpop.permute.xlu0 %584
  %588 = vset.pattern.permute.xlu0 0
  %589 = vperm.xlu0 %588, %v463
  %v590 = vpop.permute.xlu0 %589
  %593 = vset.pattern.permute.xlu0 0
  %594 = vperm.xlu0 %593, %v464
  %v595 = vpop.permute.xlu0 %594
  %v597 = vmul.f32 %v475, %v270
  %v598 = vmul.f32 %v475, %v271
  %v599 = vmul.f32 %v480, %v272
  %v600 = vmul.f32 %v480, %v273
  %v601 = vmul.f32 %v485, %v274
  %v602 = vmul.f32 %v485, %v275
  %v603 = vmul.f32 %v490, %v276
  %v604 = vmul.f32 %v490, %v277
  %v605 = vmul.f32 %v495, %v278
  %v606 = vmul.f32 %v495, %v279
  %v607 = vmul.f32 %v500, %v280
  %v608 = vmul.f32 %v500, %v281
  %v609 = vmul.f32 %v505, %v282
  %v610 = vmul.f32 %v505, %v283
  %v611 = vmul.f32 %v510, %v284
  %v612 = vmul.f32 %v510, %v285
  %v613 = vmul.f32 %v515, %v286
  %v614 = vmul.f32 %v515, %v287
  %v615 = vmul.f32 %v520, %v288
  %v616 = vmul.f32 %v520, %v289
  %v617 = vmul.f32 %v525, %v290
  %v618 = vmul.f32 %v525, %v291
  %v619 = vmul.f32 %v530, %v292
  %v620 = vmul.f32 %v530, %v293
  %v621 = vmul.f32 %v535, %v294
  %v622 = vmul.f32 %v535, %v295
  %v623 = vmul.f32 %v540, %v296
  %v624 = vmul.f32 %v540, %v297
  %v625 = vmul.f32 %v545, %v298
  %v626 = vmul.f32 %v545, %v299
  %v627 = vmul.f32 %v550, %v300
  %v628 = vmul.f32 %v550, %v301
  %v629 = vmul.f32 %v555, %v302
  %v630 = vmul.f32 %v555, %v303
  %v631 = vmul.f32 %v560, %v304
  %v632 = vmul.f32 %v560, %v305
  %v633 = vmul.f32 %v565, %v306
  %v634 = vmul.f32 %v565, %v307
  %v635 = vmul.f32 %v570, %v308
  %v636 = vmul.f32 %v570, %v309
  %v637 = vmul.f32 %v575, %v310
  %v638 = vmul.f32 %v575, %v311
  %v639 = vmul.f32 %v580, %v312
  %v640 = vmul.f32 %v580, %v313
  %v641 = vmul.f32 %v585, %v314
  %v642 = vmul.f32 %v585, %v315
  %v643 = vmul.f32 %v590, %v316
  %v644 = vmul.f32 %v590, %v317
  %v645 = vmul.f32 %v595, %v318
  %v646 = vmul.f32 %v595, %v319
  %v647 = vmul.f32 %v597, %v406
  %v648 = vmul.f32 %v598, %v407
  %v649 = vmul.f32 %v599, %v406
  %v650 = vmul.f32 %v600, %v407
  %v651 = vmul.f32 %v601, %v406
  %v652 = vmul.f32 %v602, %v407
  %v653 = vmul.f32 %v603, %v406
  %v654 = vmul.f32 %v604, %v407
  %v655 = vmul.f32 %v605, %v406
  %v656 = vmul.f32 %v606, %v407
  %v657 = vmul.f32 %v607, %v406
  %v658 = vmul.f32 %v608, %v407
  %v659 = vmul.f32 %v609, %v406
  %v660 = vmul.f32 %v610, %v407
  %v661 = vmul.f32 %v611, %v406
  %v662 = vmul.f32 %v612, %v407
  %v663 = vmul.f32 %v613, %v406
  %v664 = vmul.f32 %v614, %v407
  %v665 = vmul.f32 %v615, %v406
  %v666 = vmul.f32 %v616, %v407
  %v667 = vmul.f32 %v617, %v406
  %v668 = vmul.f32 %v618, %v407
  %v669 = vmul.f32 %v619, %v406
  %v670 = vmul.f32 %v620, %v407
  %v671 = vmul.f32 %v621, %v406
  %v672 = vmul.f32 %v622, %v407
  %v673 = vmul.f32 %v623, %v406
  %v674 = vmul.f32 %v624, %v407
  %v675 = vmul.f32 %v625, %v406
  %v676 = vmul.f32 %v626, %v407
  %v677 = vmul.f32 %v627, %v406
  %v678 = vmul.f32 %v628, %v407
  %v679 = vmul.f32 %v629, %v406
  %v680 = vmul.f32 %v630, %v407
  %v681 = vmul.f32 %v631, %v406
  %v682 = vmul.f32 %v632, %v407
  %v683 = vmul.f32 %v633, %v406
  %v684 = vmul.f32 %v634, %v407
  %v685 = vmul.f32 %v635, %v406
  %v686 = vmul.f32 %v636, %v407
  %v687 = vmul.f32 %v637, %v406
  %v688 = vmul.f32 %v638, %v407
  %v689 = vmul.f32 %v639, %v406
  %v690 = vmul.f32 %v640, %v407
  %v691 = vmul.f32 %v641, %v406
  %v692 = vmul.f32 %v642, %v407
  %v693 = vmul.f32 %v643, %v406
  %v694 = vmul.f32 %v644, %v407
  %v695 = vmul.f32 %v645, %v406
  %v696 = vmul.f32 %v646, %v407
  %v697 = vld [vmem:[%s1] sm:$0xff]
  %v698 = vld [vmem:[%s1 + $0x8] sm:$0xff]
  %v699 = vld [vmem:[%s1 + $0x10] sm:$0xff]
  %v700 = vld [vmem:[%s1 + $0x18] sm:$0xff]
  %v701 = vld [vmem:[%s1 + $0x20] sm:$0xff]
  %v702 = vld [vmem:[%s1 + $0x28] sm:$0xff]
  %v703 = vld [vmem:[%s1 + $0x30] sm:$0xff]
  %v704 = vld [vmem:[%s1 + $0x38] sm:$0xff]
  %v705 = vld [vmem:[%s1 + $0x40] sm:$0xff]
  %v706 = vld [vmem:[%s1 + $0x48] sm:$0xff]
  %v707 = vld [vmem:[%s1 + $0x50] sm:$0xff]
  %v708 = vld [vmem:[%s1 + $0x58] sm:$0xff]
  %v709 = vld [vmem:[%s1 + $0x60] sm:$0xff]
  %v710 = vld [vmem:[%s1 + $0x68] sm:$0xff]
  %v711 = vld [vmem:[%s1 + $0x70] sm:$0xff]
  %v712 = vld [vmem:[%s1 + $0x78] sm:$0xff]
  %v713 = vld [vmem:[%s1 + $0x80] sm:$0xff]
  %v714 = vld [vmem:[%s1 + $0x88] sm:$0xff]
  %v715 = vld [vmem:[%s1 + $0x90] sm:$0xff]
  %v716 = vld [vmem:[%s1 + $0x98] sm:$0xff]
  %v717 = vld [vmem:[%s1 + $0xa0] sm:$0xff]
  %v718 = vld [vmem:[%s1 + $0xa8] sm:$0xff]
  %v719 = vld [vmem:[%s1 + $0xb0] sm:$0xff]
  %v720 = vld [vmem:[%s1 + $0xb8] sm:$0xff]
  %v721 = vld [vmem:[%s1 + $0xc0] sm:$0xff]
  %v722 = vld [vmem:[%s1 + $0xc8] sm:$0xff]
  %v723 = vld [vmem:[%s1 + $0xd0] sm:$0xff]
  %v724 = vld [vmem:[%s1 + $0xd8] sm:$0xff]
  %v725 = vld [vmem:[%s1 + $0xe0] sm:$0xff]
  %v726 = vld [vmem:[%s1 + $0xe8] sm:$0xff]
  %v727 = vld [vmem:[%s1 + $0xf0] sm:$0xff]
  %v728 = vld [vmem:[%s1 + $0xf8] sm:$0xff]
  %v729 = vld [vmem:[%s1 + $0x100] sm:$0xff]
  %v730 = vld [vmem:[%s1 + $0x108] sm:$0xff]
  %v731 = vld [vmem:[%s1 + $0x110] sm:$0xff]
  %v732 = vld [vmem:[%s1 + $0x118] sm:$0xff]
  %v733 = vld [vmem:[%s1 + $0x120] sm:$0xff]
  %v734 = vld [vmem:[%s1 + $0x128] sm:$0xff]
  %v735 = vld [vmem:[%s1 + $0x130] sm:$0xff]
  %v736 = vld [vmem:[%s1 + $0x138] sm:$0xff]
  %v737 = vld [vmem:[%s1 + $0x140] sm:$0xff]
  %v738 = vld [vmem:[%s1 + $0x148] sm:$0xff]
  %v739 = vld [vmem:[%s1 + $0x150] sm:$0xff]
  %v740 = vld [vmem:[%s1 + $0x158] sm:$0xff]
  %v741 = vld [vmem:[%s1 + $0x160] sm:$0xff]
  %v742 = vld [vmem:[%s1 + $0x168] sm:$0xff]
  %v743 = vld [vmem:[%s1 + $0x170] sm:$0xff]
  %v744 = vld [vmem:[%s1 + $0x178] sm:$0xff]
  %v745 = vld [vmem:[%s1 + $0x180] sm:$0xff]
  %v746 = vld [vmem:[%s1 + $0x188] sm:$0xff]
  %v747 = vld [vmem:[%s2] sm:$0xff]
  %v748 = vld [vmem:[%s2 + $0x8] sm:$0xff]
  %v749 = vld [vmem:[%s2 + $0x10] sm:$0xff]
  %v750 = vld [vmem:[%s2 + $0x18] sm:$0xff]
  %v751 = vld [vmem:[%s2 + $0x20] sm:$0xff]
  %v752 = vld [vmem:[%s2 + $0x28] sm:$0xff]
  %v753 = vld [vmem:[%s2 + $0x30] sm:$0xff]
  %v754 = vld [vmem:[%s2 + $0x38] sm:$0xff]
  %v755 = vld [vmem:[%s2 + $0x40] sm:$0xff]
  %v756 = vld [vmem:[%s2 + $0x48] sm:$0xff]
  %v757 = vld [vmem:[%s2 + $0x50] sm:$0xff]
  %v758 = vld [vmem:[%s2 + $0x58] sm:$0xff]
  %v759 = vld [vmem:[%s2 + $0x60] sm:$0xff]
  %v760 = vld [vmem:[%s2 + $0x68] sm:$0xff]
  %v761 = vld [vmem:[%s2 + $0x70] sm:$0xff]
  %v762 = vld [vmem:[%s2 + $0x78] sm:$0xff]
  %v763 = vld [vmem:[%s2 + $0x80] sm:$0xff]
  %v764 = vld [vmem:[%s2 + $0x88] sm:$0xff]
  %v765 = vld [vmem:[%s2 + $0x90] sm:$0xff]
  %v766 = vld [vmem:[%s2 + $0x98] sm:$0xff]
  %v767 = vld [vmem:[%s2 + $0xa0] sm:$0xff]
  %v768 = vld [vmem:[%s2 + $0xa8] sm:$0xff]
  %v769 = vld [vmem:[%s2 + $0xb0] sm:$0xff]
  %v770 = vld [vmem:[%s2 + $0xb8] sm:$0xff]
  %v771 = vld [vmem:[%s2 + $0xc0] sm:$0xff]
  %v773 = vsel %vm350, %v698, 0
  %v776 = vsel %vm350, %v700, 0
  %v779 = vsel %vm350, %v702, 0
  %v782 = vsel %vm350, %v704, 0
  %v785 = vsel %vm350, %v706, 0
  %v788 = vsel %vm350, %v708, 0
  %v791 = vsel %vm350, %v710, 0
  %v794 = vsel %vm350, %v712, 0
  %v797 = vsel %vm350, %v714, 0
  %v800 = vsel %vm350, %v716, 0
  %v803 = vsel %vm350, %v718, 0
  %v806 = vsel %vm350, %v720, 0
  %v809 = vsel %vm350, %v722, 0
  %v812 = vsel %vm350, %v724, 0
  %v815 = vsel %vm350, %v726, 0
  %v818 = vsel %vm350, %v728, 0
  %v821 = vsel %vm350, %v730, 0
  %v824 = vsel %vm350, %v732, 0
  %v827 = vsel %vm350, %v734, 0
  %v830 = vsel %vm350, %v736, 0
  %v833 = vsel %vm350, %v738, 0
  %v836 = vsel %vm350, %v740, 0
  %v839 = vsel %vm350, %v742, 0
  %v842 = vsel %vm350, %v744, 0
  %v845 = vsel %vm350, %v746, 0
  %847 = vmatprep.subr.mxu0 0.0
  %848 = vmatpush1.msra.mxu0 %v762
  %849 = vmatprep.subr.mxu0 0.0
  %850 = vmatpush1.msra.mxu0 %v761
  %851 = vmatprep.subr.mxu0 0.0
  %852 = vmatpush1.msra.mxu0 %v760
  %853 = vmatprep.subr.mxu0 0.0
  %854 = vmatpush1.msra.mxu0 %v759
  %855 = vmatprep.subr.mxu0 0.0
  %856 = vmatpush1.msra.mxu0 %v758
  %857 = vmatprep.subr.mxu0 0.0
  %858 = vmatpush1.msra.mxu0 %v757
  %859 = vmatprep.subr.mxu0 0.0
  %860 = vmatpush1.msra.mxu0 %v756
  %861 = vmatprep.subr.mxu0 0.0
  %862 = vmatpush1.msra.mxu0 %v755
  %863 = vmatprep.subr.mxu0 0.0
  %864 = vmatpush1.msra.mxu0 %v754
  %865 = vmatprep.subr.mxu0 0.0
  %866 = vmatpush1.msra.mxu0 %v753
  %867 = vmatprep.subr.mxu0 0.0
  %868 = vmatpush1.msra.mxu0 %v752
  %869 = vmatprep.subr.mxu0 0.0
  %870 = vmatpush1.msra.mxu0 %v751
  %871 = vmatprep.subr.mxu0 0.0
  %872 = vmatpush1.msra.mxu0 %v750
  %873 = vmatprep.subr.mxu0 0.0
  %874 = vmatpush1.msra.mxu0 %v749
  %875 = vmatprep.subr.mxu0 0.0
  %876 = vmatpush1.msra.mxu0 %v748
  %877 = vmatprep.subr.mxu0 0.0
  %878 = vmatpush1.msra.mxu0 %v747
  %879 = vmatprep.subr.mxu0 0.0
  %880 = vmatpush2.msra.mxu0 0.0
  %881 = vmatprep.subr.mxu0 0.0
  %882 = vmatpush2.msra.mxu0 0.0
  %883 = vmatprep.subr.mxu0 0.0
  %884 = vmatpush2.msra.mxu0 0.0
  %885 = vmatprep.subr.mxu0 0.0
  %886 = vmatpush2.msra.mxu0 0.0
  %887 = vmatprep.subr.mxu0 0.0
  %888 = vmatpush2.msra.mxu0 0.0
  %889 = vmatprep.subr.mxu0 0.0
  %890 = vmatpush2.msra.mxu0 0.0
  %891 = vmatprep.subr.mxu0 0.0
  %892 = vmatpush2.msra.mxu0 0.0
  %893 = vmatprep.subr.mxu0 0.0
  %894 = vmatpush2.msra.mxu0 %v771
  %895 = vmatprep.subr.mxu0 0.0
  %896 = vmatpush2.msra.mxu0 %v770
  %897 = vmatprep.subr.mxu0 0.0
  %898 = vmatpush2.msra.mxu0 %v769
  %899 = vmatprep.subr.mxu0 0.0
  %900 = vmatpush2.msra.mxu0 %v768
  %901 = vmatprep.subr.mxu0 0.0
  %902 = vmatpush2.msra.mxu0 %v767
  %903 = vmatprep.subr.mxu0 0.0
  %904 = vmatpush2.msra.mxu0 %v766
  %905 = vmatprep.subr.mxu0 0.0
  %906 = vmatpush2.msra.mxu0 %v765
  %907 = vmatprep.subr.mxu0 0.0
  %908 = vmatpush2.msra.mxu0 %v764
  %909 = vmatprep.subr.mxu0 0.0
  %910 = vmatpush2.msra.mxu0 %v763
  %911 = vmatprep.mubr.f32.mxu0 %v773
  %912 = vmatmul.mubr.f32.gmra.mxu0 %v697
  %v913 = vpop.f32.mrf.mxu0
  %v914 = vadd.f32 0.0, %v913
  %v915 = vpop.f32.mrf.mxu0
  %916 = vmatprep.mubr.f32.mxu0 %v776
  %917 = vmatmul.mubr.f32.gmra.mxu0 %v699
  %v918 = vpop.f32.mrf.mxu0
  %v919 = vadd.f32 0.0, %v918
  %v920 = vpop.f32.mrf.mxu0
  %921 = vmatprep.mubr.f32.mxu0 %v779
  %922 = vmatmul.mubr.f32.gmra.mxu0 %v701
  %v923 = vpop.f32.mrf.mxu0
  %v924 = vadd.f32 0.0, %v923
  %v925 = vpop.f32.mrf.mxu0
  %926 = vmatprep.mubr.f32.mxu0 %v782
  %927 = vmatmul.mubr.f32.gmra.mxu0 %v703
  %v928 = vpop.f32.mrf.mxu0
  %v929 = vadd.f32 0.0, %v928
  %v930 = vpop.f32.mrf.mxu0
  %931 = vmatprep.mubr.f32.mxu0 %v785
  %932 = vmatmul.mubr.f32.gmra.mxu0 %v705
  %v933 = vpop.f32.mrf.mxu0
  %v934 = vadd.f32 0.0, %v933
  %v935 = vpop.f32.mrf.mxu0
  %936 = vmatprep.mubr.f32.mxu0 %v788
  %937 = vmatmul.mubr.f32.gmra.mxu0 %v707
  %v938 = vpop.f32.mrf.mxu0
  %v939 = vadd.f32 0.0, %v938
  %v940 = vpop.f32.mrf.mxu0
  %941 = vmatprep.mubr.f32.mxu0 %v791
  %942 = vmatmul.mubr.f32.gmra.mxu0 %v709
  %v943 = vpop.f32.mrf.mxu0
  %v944 = vadd.f32 0.0, %v943
  %v945 = vpop.f32.mrf.mxu0
  %946 = vmatprep.mubr.f32.mxu0 %v794
  %947 = vmatmul.mubr.f32.gmra.mxu0 %v711
  %v948 = vpop.f32.mrf.mxu0
  %v949 = vadd.f32 0.0, %v948
  %v950 = vpop.f32.mrf.mxu0
  %951 = vmatprep.mubr.f32.mxu0 %v797
  %952 = vmatmul.mubr.f32.gmra.mxu0 %v713
  %v953 = vpop.f32.mrf.mxu0
  %v954 = vadd.f32 0.0, %v953
  %v955 = vpop.f32.mrf.mxu0
  %956 = vmatprep.mubr.f32.mxu0 %v800
  %957 = vmatmul.mubr.f32.gmra.mxu0 %v715
  %v958 = vpop.f32.mrf.mxu0
  %v959 = vadd.f32 0.0, %v958
  %v960 = vpop.f32.mrf.mxu0
  %961 = vmatprep.mubr.f32.mxu0 %v803
  %962 = vmatmul.mubr.f32.gmra.mxu0 %v717
  %v963 = vpop.f32.mrf.mxu0
  %v964 = vadd.f32 0.0, %v963
  %v965 = vpop.f32.mrf.mxu0
  %966 = vmatprep.mubr.f32.mxu0 %v806
  %967 = vmatmul.mubr.f32.gmra.mxu0 %v719
  %v968 = vpop.f32.mrf.mxu0
  %v969 = vadd.f32 0.0, %v968
  %v970 = vpop.f32.mrf.mxu0
  %971 = vmatprep.mubr.f32.mxu0 %v809
  %972 = vmatmul.mubr.f32.gmra.mxu0 %v721
  %v973 = vpop.f32.mrf.mxu0
  %v974 = vadd.f32 0.0, %v973
  %v975 = vpop.f32.mrf.mxu0
  %976 = vmatprep.mubr.f32.mxu0 %v812
  %977 = vmatmul.mubr.f32.gmra.mxu0 %v723
  %v978 = vpop.f32.mrf.mxu0
  %v979 = vadd.f32 0.0, %v978
  %v980 = vpop.f32.mrf.mxu0
  %981 = vmatprep.mubr.f32.mxu0 %v815
  %982 = vmatmul.mubr.f32.gmra.mxu0 %v725
  %v983 = vpop.f32.mrf.mxu0
  %v984 = vadd.f32 0.0, %v983
  %v985 = vpop.f32.mrf.mxu0
  %986 = vmatprep.mubr.f32.mxu0 %v818
  %987 = vmatmul.mubr.f32.gmra.mxu0 %v727
  %v988 = vpop.f32.mrf.mxu0
  %v989 = vadd.f32 0.0, %v988
  %v990 = vpop.f32.mrf.mxu0
  %991 = vmatprep.mubr.f32.mxu0 %v821
  %992 = vmatmul.mubr.f32.gmra.mxu0 %v729
  %v993 = vpop.f32.mrf.mxu0
  %v994 = vadd.f32 0.0, %v993
  %v995 = vpop.f32.mrf.mxu0
  %996 = vmatprep.mubr.f32.mxu0 %v824
  %997 = vmatmul.mubr.f32.gmra.mxu0 %v731
  %v998 = vpop.f32.mrf.mxu0
  %v999 = vadd.f32 0.0, %v998
  %v1000 = vpop.f32.mrf.mxu0
  %1001 = vmatprep.mubr.f32.mxu0 %v827
  %1002 = vmatmul.mubr.f32.gmra.mxu0 %v733
  %v1003 = vpop.f32.mrf.mxu0
  %v1004 = vadd.f32 0.0, %v1003
  %v1005 = vpop.f32.mrf.mxu0
  %1006 = vmatprep.mubr.f32.mxu0 %v830
  %1007 = vmatmul.mubr.f32.gmra.mxu0 %v735
  %v1008 = vpop.f32.mrf.mxu0
  %v1009 = vadd.f32 0.0, %v1008
  %v1010 = vpop.f32.mrf.mxu0
  %1011 = vmatprep.mubr.f32.mxu0 %v833
  %1012 = vmatmul.mubr.f32.gmra.mxu0 %v737
  %v1013 = vpop.f32.mrf.mxu0
  %v1014 = vadd.f32 0.0, %v1013
  %v1015 = vpop.f32.mrf.mxu0
  %1016 = vmatprep.mubr.f32.mxu0 %v836
  %1017 = vmatmul.mubr.f32.gmra.mxu0 %v739
  %v1018 = vpop.f32.mrf.mxu0
  %v1019 = vadd.f32 0.0, %v1018
  %v1020 = vpop.f32.mrf.mxu0
  %1021 = vmatprep.mubr.f32.mxu0 %v839
  %1022 = vmatmul.mubr.f32.gmra.mxu0 %v741
  %v1023 = vpop.f32.mrf.mxu0
  %v1024 = vadd.f32 0.0, %v1023
  %v1025 = vpop.f32.mrf.mxu0
  %1026 = vmatprep.mubr.f32.mxu0 %v842
  %1027 = vmatmul.mubr.f32.gmra.mxu0 %v743
  %v1028 = vpop.f32.mrf.mxu0
  %v1029 = vadd.f32 0.0, %v1028
  %v1030 = vpop.f32.mrf.mxu0
  %1031 = vmatprep.mubr.f32.mxu0 %v845
  %1032 = vmatmul.mubr.f32.gmra.mxu0 %v745
  %v1033 = vpop.f32.mrf.mxu0
  %v1034 = vadd.f32 0.0, %v1033
  %v1035 = vpop.f32.mrf.mxu0
  %1036 = vdwg.mxu0
  %v1037 = vld [vmem:[%s3] sm:$0x1]
  %v1039 = vlaneseq
  %v1040 = vshrl.u32 %v1039, 7
  %v1041 = vsub.s32 0, %v1040
  %v1042 = vrot.slane %v1037, %v1041
  %v1045 = vsel %vm350, %v648, 0
  %v1048 = vsel %vm350, %v650, 0
  %v1051 = vsel %vm350, %v652, 0
  %v1054 = vsel %vm350, %v654, 0
  %v1057 = vsel %vm350, %v656, 0
  %v1060 = vsel %vm350, %v658, 0
  %v1063 = vsel %vm350, %v660, 0
  %v1066 = vsel %vm350, %v662, 0
  %v1069 = vsel %vm350, %v664, 0
  %v1072 = vsel %vm350, %v666, 0
  %v1075 = vsel %vm350, %v668, 0
  %v1078 = vsel %vm350, %v670, 0
  %v1081 = vsel %vm350, %v672, 0
  %v1084 = vsel %vm350, %v674, 0
  %v1087 = vsel %vm350, %v676, 0
  %v1090 = vsel %vm350, %v678, 0
  %v1093 = vsel %vm350, %v680, 0
  %v1096 = vsel %vm350, %v682, 0
  %v1099 = vsel %vm350, %v684, 0
  %v1102 = vsel %vm350, %v686, 0
  %v1105 = vsel %vm350, %v688, 0
  %v1108 = vsel %vm350, %v690, 0
  %v1111 = vsel %vm350, %v692, 0
  %v1114 = vsel %vm350, %v694, 0
  %v1117 = vsel %vm350, %v696, 0
  %1119 = vmatprep.subr.mxu0 0.0
  %1120 = vmatpush1.msra.mxu0 %v989
  %1121 = vmatprep.subr.mxu0 0.0
  %1122 = vmatpush1.msra.mxu0 %v984
  %1123 = vmatprep.subr.mxu0 0.0
  %1124 = vmatpush1.msra.mxu0 %v979
  %1125 = vmatprep.subr.mxu0 0.0
  %1126 = vmatpush1.msra.mxu0 %v974
  %1127 = vmatprep.subr.mxu0 0.0
  %1128 = vmatpush1.msra.mxu0 %v969
  %1129 = vmatprep.subr.mxu0 0.0
  %1130 = vmatpush1.msra.mxu0 %v964
  %1131 = vmatprep.subr.mxu0 0.0
  %1132 = vmatpush1.msra.mxu0 %v959
  %1133 = vmatprep.subr.mxu0 0.0
  %1134 = vmatpush1.msra.mxu0 %v954
  %1135 = vmatprep.subr.mxu0 0.0
  %1136 = vmatpush1.msra.mxu0 %v949
  %1137 = vmatprep.subr.mxu0 0.0
  %1138 = vmatpush1.msra.mxu0 %v944
  %1139 = vmatprep.subr.mxu0 0.0
  %1140 = vmatpush1.msra.mxu0 %v939
  %1141 = vmatprep.subr.mxu0 0.0
  %1142 = vmatpush1.msra.mxu0 %v934
  %1143 = vmatprep.subr.mxu0 0.0
  %1144 = vmatpush1.msra.mxu0 %v929
  %1145 = vmatprep.subr.mxu0 0.0
  %1146 = vmatpush1.msra.mxu0 %v924
  %1147 = vmatprep.subr.mxu0 0.0
  %1148 = vmatpush1.msra.mxu0 %v919
  %1149 = vmatprep.subr.mxu0 0.0
  %1150 = vmatpush1.msra.mxu0 %v914
  %1151 = vmatprep.subr.mxu0 0.0
  %1152 = vmatpush2.msra.mxu0 0.0
  %1153 = vmatprep.subr.mxu0 0.0
  %1154 = vmatpush2.msra.mxu0 0.0
  %1155 = vmatprep.subr.mxu0 0.0
  %1156 = vmatpush2.msra.mxu0 0.0
  %1157 = vmatprep.subr.mxu0 0.0
  %1158 = vmatpush2.msra.mxu0 0.0
  %1159 = vmatprep.subr.mxu0 0.0
  %1160 = vmatpush2.msra.mxu0 0.0
  %1161 = vmatprep.subr.mxu0 0.0
  %1162 = vmatpush2.msra.mxu0 0.0
  %1163 = vmatprep.subr.mxu0 0.0
  %1164 = vmatpush2.msra.mxu0 0.0
  %1165 = vmatprep.subr.mxu0 0.0
  %1166 = vmatpush2.msra.mxu0 %v1034
  %1167 = vmatprep.subr.mxu0 0.0
  %1168 = vmatpush2.msra.mxu0 %v1029
  %1169 = vmatprep.subr.mxu0 0.0
  %1170 = vmatpush2.msra.mxu0 %v1024
  %1171 = vmatprep.subr.mxu0 0.0
  %1172 = vmatpush2.msra.mxu0 %v1019
  %1173 = vmatprep.subr.mxu0 0.0
  %1174 = vmatpush2.msra.mxu0 %v1014
  %1175 = vmatprep.subr.mxu0 0.0
  %1176 = vmatpush2.msra.mxu0 %v1009
  %1177 = vmatprep.subr.mxu0 0.0
  %1178 = vmatpush2.msra.mxu0 %v1004
  %1179 = vmatprep.subr.mxu0 0.0
  %1180 = vmatpush2.msra.mxu0 %v999
  %1181 = vmatprep.subr.mxu0 0.0
  %1182 = vmatpush2.msra.mxu0 %v994
  %1183 = vmatprep.mubr.f32.mxu0 %v1045
  %1184 = vmatmul.mubr.f32.gmra.mxu0 %v647
  %v1185 = vpop.f32.mrf.mxu0
  %v1186 = vadd.f32 %v1042, %v1185
  %v1187 = vpop.f32.mrf.mxu0
  %1188 = vmatprep.mubr.f32.mxu0 %v1048
  %1189 = vmatmul.mubr.f32.gmra.mxu0 %v649
  %v1190 = vpop.f32.mrf.mxu0
  %v1191 = vadd.f32 %v1042, %v1190
  %v1192 = vpop.f32.mrf.mxu0
  %1193 = vmatprep.mubr.f32.mxu0 %v1051
  %1194 = vmatmul.mubr.f32.gmra.mxu0 %v651
  %v1195 = vpop.f32.mrf.mxu0
  %v1196 = vadd.f32 %v1042, %v1195
  %v1197 = vpop.f32.mrf.mxu0
  %1198 = vmatprep.mubr.f32.mxu0 %v1054
  %1199 = vmatmul.mubr.f32.gmra.mxu0 %v653
  %v1200 = vpop.f32.mrf.mxu0
  %v1201 = vadd.f32 %v1042, %v1200
  %v1202 = vpop.f32.mrf.mxu0
  %1203 = vmatprep.mubr.f32.mxu0 %v1057
  %1204 = vmatmul.mubr.f32.gmra.mxu0 %v655
  %v1205 = vpop.f32.mrf.mxu0
  %v1206 = vadd.f32 %v1042, %v1205
  %v1207 = vpop.f32.mrf.mxu0
  %1208 = vmatprep.mubr.f32.mxu0 %v1060
  %1209 = vmatmul.mubr.f32.gmra.mxu0 %v657
  %v1210 = vpop.f32.mrf.mxu0
  %v1211 = vadd.f32 %v1042, %v1210
  %v1212 = vpop.f32.mrf.mxu0
  %1213 = vmatprep.mubr.f32.mxu0 %v1063
  %1214 = vmatmul.mubr.f32.gmra.mxu0 %v659
  %v1215 = vpop.f32.mrf.mxu0
  %v1216 = vadd.f32 %v1042, %v1215
  %v1217 = vpop.f32.mrf.mxu0
  %1218 = vmatprep.mubr.f32.mxu0 %v1066
  %1219 = vmatmul.mubr.f32.gmra.mxu0 %v661
  %v1220 = vpop.f32.mrf.mxu0
  %v1221 = vadd.f32 %v1042, %v1220
  %v1222 = vpop.f32.mrf.mxu0
  %1223 = vmatprep.mubr.f32.mxu0 %v1069
  %1224 = vmatmul.mubr.f32.gmra.mxu0 %v663
  %v1225 = vpop.f32.mrf.mxu0
  %v1226 = vadd.f32 %v1042, %v1225
  %v1227 = vpop.f32.mrf.mxu0
  %1228 = vmatprep.mubr.f32.mxu0 %v1072
  %1229 = vmatmul.mubr.f32.gmra.mxu0 %v665
  %v1230 = vpop.f32.mrf.mxu0
  %v1231 = vadd.f32 %v1042, %v1230
  %v1232 = vpop.f32.mrf.mxu0
  %1233 = vmatprep.mubr.f32.mxu0 %v1075
  %1234 = vmatmul.mubr.f32.gmra.mxu0 %v667
  %v1235 = vpop.f32.mrf.mxu0
  %v1236 = vadd.f32 %v1042, %v1235
  %v1237 = vpop.f32.mrf.mxu0
  %1238 = vmatprep.mubr.f32.mxu0 %v1078
  %1239 = vmatmul.mubr.f32.gmra.mxu0 %v669
  %v1240 = vpop.f32.mrf.mxu0
  %v1241 = vadd.f32 %v1042, %v1240
  %v1242 = vpop.f32.mrf.mxu0
  %1243 = vmatprep.mubr.f32.mxu0 %v1081
  %1244 = vmatmul.mubr.f32.gmra.mxu0 %v671
  %v1245 = vpop.f32.mrf.mxu0
  %v1246 = vadd.f32 %v1042, %v1245
  %v1247 = vpop.f32.mrf.mxu0
  %1248 = vmatprep.mubr.f32.mxu0 %v1084
  %1249 = vmatmul.mubr.f32.gmra.mxu0 %v673
  %v1250 = vpop.f32.mrf.mxu0
  %v1251 = vadd.f32 %v1042, %v1250
  %v1252 = vpop.f32.mrf.mxu0
  %1253 = vmatprep.mubr.f32.mxu0 %v1087
  %1254 = vmatmul.mubr.f32.gmra.mxu0 %v675
  %v1255 = vpop.f32.mrf.mxu0
  %v1256 = vadd.f32 %v1042, %v1255
  %v1257 = vpop.f32.mrf.mxu0
  %1258 = vmatprep.mubr.f32.mxu0 %v1090
  %1259 = vmatmul.mubr.f32.gmra.mxu0 %v677
  %v1260 = vpop.f32.mrf.mxu0
  %v1261 = vadd.f32 %v1042, %v1260
  %v1262 = vpop.f32.mrf.mxu0
  %1263 = vmatprep.mubr.f32.mxu0 %v1093
  %1264 = vmatmul.mubr.f32.gmra.mxu0 %v679
  %v1265 = vpop.f32.mrf.mxu0
  %v1266 = vadd.f32 %v1042, %v1265
  %v1267 = vpop.f32.mrf.mxu0
  %1268 = vmatprep.mubr.f32.mxu0 %v1096
  %1269 = vmatmul.mubr.f32.gmra.mxu0 %v681
  %v1270 = vpop.f32.mrf.mxu0
  %v1271 = vadd.f32 %v1042, %v1270
  %v1272 = vpop.f32.mrf.mxu0
  %1273 = vmatprep.mubr.f32.mxu0 %v1099
  %1274 = vmatmul.mubr.f32.gmra.mxu0 %v683
  %v1275 = vpop.f32.mrf.mxu0
  %v1276 = vadd.f32 %v1042, %v1275
  %v1277 = vpop.f32.mrf.mxu0
  %1278 = vmatprep.mubr.f32.mxu0 %v1102
  %1279 = vmatmul.mubr.f32.gmra.mxu0 %v685
  %v1280 = vpop.f32.mrf.mxu0
  %v1281 = vadd.f32 %v1042, %v1280
  %v1282 = vpop.f32.mrf.mxu0
  %1283 = vmatprep.mubr.f32.mxu0 %v1105
  %1284 = vmatmul.mubr.f32.gmra.mxu0 %v687
  %v1285 = vpop.f32.mrf.mxu0
  %v1286 = vadd.f32 %v1042, %v1285
  %v1287 = vpop.f32.mrf.mxu0
  %1288 = vmatprep.mubr.f32.mxu0 %v1108
  %1289 = vmatmul.mubr.f32.gmra.mxu0 %v689
  %v1290 = vpop.f32.mrf.mxu0
  %v1291 = vadd.f32 %v1042, %v1290
  %v1292 = vpop.f32.mrf.mxu0
  %1293 = vmatprep.mubr.f32.mxu0 %v1111
  %1294 = vmatmul.mubr.f32.gmra.mxu0 %v691
  %v1295 = vpop.f32.mrf.mxu0
  %v1296 = vadd.f32 %v1042, %v1295
  %v1297 = vpop.f32.mrf.mxu0
  %1298 = vmatprep.mubr.f32.mxu0 %v1114
  %1299 = vmatmul.mubr.f32.gmra.mxu0 %v693
  %v1300 = vpop.f32.mrf.mxu0
  %v1301 = vadd.f32 %v1042, %v1300
  %v1302 = vpop.f32.mrf.mxu0
  %1303 = vmatprep.mubr.f32.mxu0 %v1117
  %1304 = vmatmul.mubr.f32.gmra.mxu0 %v695
  %v1305 = vpop.f32.mrf.mxu0
  %v1306 = vadd.f32 %v1042, %v1305
  %v1307 = vpop.f32.mrf.mxu0
  %1308 = vdwg.mxu0
  %v1309 = vmax.f32 %v1186, 0.0
  %v1310 = vmax.f32 %v1191, 0.0
  %v1311 = vmax.f32 %v1196, 0.0
  %v1312 = vmax.f32 %v1201, 0.0
  %v1313 = vmax.f32 %v1206, 0.0
  %v1314 = vmax.f32 %v1211, 0.0
  %v1315 = vmax.f32 %v1216, 0.0
  %v1316 = vmax.f32 %v1221, 0.0
  %v1317 = vmax.f32 %v1226, 0.0
  %v1318 = vmax.f32 %v1231, 0.0
  %v1319 = vmax.f32 %v1236, 0.0
  %v1320 = vmax.f32 %v1241, 0.0
  %v1321 = vmax.f32 %v1246, 0.0
  %v1322 = vmax.f32 %v1251, 0.0
  %v1323 = vmax.f32 %v1256, 0.0
  %v1324 = vmax.f32 %v1261, 0.0
  %v1325 = vmax.f32 %v1266, 0.0
  %v1326 = vmax.f32 %v1271, 0.0
  %v1327 = vmax.f32 %v1276, 0.0
  %v1328 = vmax.f32 %v1281, 0.0
  %v1329 = vmax.f32 %v1286, 0.0
  %v1330 = vmax.f32 %v1291, 0.0
  %v1331 = vmax.f32 %v1296, 0.0
  %v1332 = vmax.f32 %v1301, 0.0
  %v1333 = vmax.f32 %v1306, 0.0
  %v1334 = vld [vmem:[%s4] sm:$0xff]
  %v1335 = vld [vmem:[%s4 + $0x8] sm:$0xff]
  %v1336 = vld [vmem:[%s4 + $0x10] sm:$0xff]
  %v1337 = vld [vmem:[%s4 + $0x18] sm:$0xff]
  %v1338 = vld [vmem:[%s4 + $0x20] sm:$0xff]
  %v1339 = vld [vmem:[%s4 + $0x28] sm:$0xff]
  %v1340 = vld [vmem:[%s4 + $0x30] sm:$0xff]
  %v1341 = vld [vmem:[%s4 + $0x38] sm:$0xff]
  %v1342 = vld [vmem:[%s4 + $0x40] sm:$0xff]
  %v1343 = vld [vmem:[%s4 + $0x48] sm:$0xff]
  %v1344 = vld [vmem:[%s4 + $0x50] sm:$0xff]
  %v1345 = vld [vmem:[%s4 + $0x58] sm:$0xff]
  %v1346 = vld [vmem:[%s4 + $0x60] sm:$0xff]
  %v1347 = vld [vmem:[%s4 + $0x68] sm:$0xff]
  %v1348 = vld [vmem:[%s4 + $0x70] sm:$0xff]
  %v1349 = vld [vmem:[%s4 + $0x78] sm:$0xff]
  %1350 = vmatprep.subr.mxu0 0.0
  %1351 = vmatpush1.msra.mxu0 %v1349
  %1352 = vmatprep.subr.mxu0 0.0
  %1353 = vmatpush1.msra.mxu0 %v1348
  %1354 = vmatprep.subr.mxu0 0.0
  %1355 = vmatpush1.msra.mxu0 %v1347
  %1356 = vmatprep.subr.mxu0 0.0
  %1357 = vmatpush1.msra.mxu0 %v1346
  %1358 = vmatprep.subr.mxu0 0.0
  %1359 = vmatpush1.msra.mxu0 %v1345
  %1360 = vmatprep.subr.mxu0 0.0
  %1361 = vmatpush1.msra.mxu0 %v1344
  %1362 = vmatprep.subr.mxu0 0.0
  %1363 = vmatpush1.msra.mxu0 %v1343
  %1364 = vmatprep.subr.mxu0 0.0
  %1365 = vmatpush1.msra.mxu0 %v1342
  %1366 = vmatprep.subr.mxu0 0.0
  %1367 = vmatpush1.msra.mxu0 %v1341
  %1368 = vmatprep.subr.mxu0 0.0
  %1369 = vmatpush1.msra.mxu0 %v1340
  %1370 = vmatprep.subr.mxu0 0.0
  %1371 = vmatpush1.msra.mxu0 %v1339
  %1372 = vmatprep.subr.mxu0 0.0
  %1373 = vmatpush1.msra.mxu0 %v1338
  %1374 = vmatprep.subr.mxu0 0.0
  %1375 = vmatpush1.msra.mxu0 %v1337
  %1376 = vmatprep.subr.mxu0 0.0
  %1377 = vmatpush1.msra.mxu0 %v1336
  %1378 = vmatprep.subr.mxu0 0.0
  %1379 = vmatpush1.msra.mxu0 %v1335
  %1380 = vmatprep.subr.mxu0 0.0
  %1381 = vmatpush1.msra.mxu0 %v1334
  %1382 = vmatprep.subr.mxu0 0.0
  %1383 = vmatpush2.msra.mxu0 0.0
  %1384 = vmatprep.subr.mxu0 0.0
  %1385 = vmatpush2.msra.mxu0 0.0
  %1386 = vmatprep.subr.mxu0 0.0
  %1387 = vmatpush2.msra.mxu0 0.0
  %1388 = vmatprep.subr.mxu0 0.0
  %1389 = vmatpush2.msra.mxu0 0.0
  %1390 = vmatprep.subr.mxu0 0.0
  %1391 = vmatpush2.msra.mxu0 0.0
  %1392 = vmatprep.subr.mxu0 0.0
  %1393 = vmatpush2.msra.mxu0 0.0
  %1394 = vmatprep.subr.mxu0 0.0
  %1395 = vmatpush2.msra.mxu0 0.0
  %1396 = vmatprep.subr.mxu0 0.0
  %1397 = vmatpush2.msra.mxu0 0.0
  %1398 = vmatprep.subr.mxu0 0.0
  %1399 = vmatpush2.msra.mxu0 0.0
  %1400 = vmatprep.subr.mxu0 0.0
  %1401 = vmatpush2.msra.mxu0 0.0
  %1402 = vmatprep.subr.mxu0 0.0
  %1403 = vmatpush2.msra.mxu0 0.0
  %1404 = vmatprep.subr.mxu0 0.0
  %1405 = vmatpush2.msra.mxu0 0.0
  %1406 = vmatprep.subr.mxu0 0.0
  %1407 = vmatpush2.msra.mxu0 0.0
  %1408 = vmatprep.subr.mxu0 0.0
  %1409 = vmatpush2.msra.mxu0 0.0
  %1410 = vmatprep.subr.mxu0 0.0
  %1411 = vmatpush2.msra.mxu0 0.0
  %1412 = vmatprep.subr.mxu0 0.0
  %1413 = vmatpush2.msra.mxu0 0.0
  %1414 = vmatprep.mubr.f32.mxu0 0.0
  %1415 = vmatmul.mubr.f32.gmra.mxu0 %v1309
  %v1416 = vpop.f32.mrf.mxu0
  %v1417 = vadd.f32 0.0, %v1416
  %v1418 = vpop.f32.mrf.mxu0
  %1419 = vmatprep.mubr.f32.mxu0 0.0
  %1420 = vmatmul.mubr.f32.gmra.mxu0 %v1310
  %v1421 = vpop.f32.mrf.mxu0
  %v1422 = vadd.f32 0.0, %v1421
  %v1423 = vpop.f32.mrf.mxu0
  %1424 = vmatprep.mubr.f32.mxu0 0.0
  %1425 = vmatmul.mubr.f32.gmra.mxu0 %v1311
  %v1426 = vpop.f32.mrf.mxu0
  %v1427 = vadd.f32 0.0, %v1426
  %v1428 = vpop.f32.mrf.mxu0
  %1429 = vmatprep.mubr.f32.mxu0 0.0
  %1430 = vmatmul.mubr.f32.gmra.mxu0 %v1312
  %v1431 = vpop.f32.mrf.mxu0
  %v1432 = vadd.f32 0.0, %v1431
  %v1433 = vpop.f32.mrf.mxu0
  %1434 = vmatprep.mubr.f32.mxu0 0.0
  %1435 = vmatmul.mubr.f32.gmra.mxu0 %v1313
  %v1436 = vpop.f32.mrf.mxu0
  %v1437 = vadd.f32 0.0, %v1436
  %v1438 = vpop.f32.mrf.mxu0
  %1439 = vmatprep.mubr.f32.mxu0 0.0
  %1440 = vmatmul.mubr.f32.gmra.mxu0 %v1314
  %v1441 = vpop.f32.mrf.mxu0
  %v1442 = vadd.f32 0.0, %v1441
  %v1443 = vpop.f32.mrf.mxu0
  %1444 = vmatprep.mubr.f32.mxu0 0.0
  %1445 = vmatmul.mubr.f32.gmra.mxu0 %v1315
  %v1446 = vpop.f32.mrf.mxu0
  %v1447 = vadd.f32 0.0, %v1446
  %v1448 = vpop.f32.mrf.mxu0
  %1449 = vmatprep.mubr.f32.mxu0 0.0
  %1450 = vmatmul.mubr.f32.gmra.mxu0 %v1316
  %v1451 = vpop.f32.mrf.mxu0
  %v1452 = vadd.f32 0.0, %v1451
  %v1453 = vpop.f32.mrf.mxu0
  %1454 = vmatprep.mubr.f32.mxu0 0.0
  %1455 = vmatmul.mubr.f32.gmra.mxu0 %v1317
  %v1456 = vpop.f32.mrf.mxu0
  %v1457 = vadd.f32 0.0, %v1456
  %v1458 = vpop.f32.mrf.mxu0
  %1459 = vmatprep.mubr.f32.mxu0 0.0
  %1460 = vmatmul.mubr.f32.gmra.mxu0 %v1318
  %v1461 = vpop.f32.mrf.mxu0
  %v1462 = vadd.f32 0.0, %v1461
  %v1463 = vpop.f32.mrf.mxu0
  %1464 = vmatprep.mubr.f32.mxu0 0.0
  %1465 = vmatmul.mubr.f32.gmra.mxu0 %v1319
  %v1466 = vpop.f32.mrf.mxu0
  %v1467 = vadd.f32 0.0, %v1466
  %v1468 = vpop.f32.mrf.mxu0
  %1469 = vmatprep.mubr.f32.mxu0 0.0
  %1470 = vmatmul.mubr.f32.gmra.mxu0 %v1320
  %v1471 = vpop.f32.mrf.mxu0
  %v1472 = vadd.f32 0.0, %v1471
  %v1473 = vpop.f32.mrf.mxu0
  %1474 = vmatprep.mubr.f32.mxu0 0.0
  %1475 = vmatmul.mubr.f32.gmra.mxu0 %v1321
  %v1476 = vpop.f32.mrf.mxu0
  %v1477 = vadd.f32 0.0, %v1476
  %v1478 = vpop.f32.mrf.mxu0
  %1479 = vmatprep.mubr.f32.mxu0 0.0
  %1480 = vmatmul.mubr.f32.gmra.mxu0 %v1322
  %v1481 = vpop.f32.mrf.mxu0
  %v1482 = vadd.f32 0.0, %v1481
  %v1483 = vpop.f32.mrf.mxu0
  %1484 = vmatprep.mubr.f32.mxu0 0.0
  %1485 = vmatmul.mubr.f32.gmra.mxu0 %v1323
  %v1486 = vpop.f32.mrf.mxu0
  %v1487 = vadd.f32 0.0, %v1486
  %v1488 = vpop.f32.mrf.mxu0
  %1489 = vmatprep.mubr.f32.mxu0 0.0
  %1490 = vmatmul.mubr.f32.gmra.mxu0 %v1324
  %v1491 = vpop.f32.mrf.mxu0
  %v1492 = vadd.f32 0.0, %v1491
  %v1493 = vpop.f32.mrf.mxu0
  %1494 = vmatprep.mubr.f32.mxu0 0.0
  %1495 = vmatmul.mubr.f32.gmra.mxu0 %v1325
  %v1496 = vpop.f32.mrf.mxu0
  %v1497 = vadd.f32 0.0, %v1496
  %v1498 = vpop.f32.mrf.mxu0
  %1499 = vmatprep.mubr.f32.mxu0 0.0
  %1500 = vmatmul.mubr.f32.gmra.mxu0 %v1326
  %v1501 = vpop.f32.mrf.mxu0
  %v1502 = vadd.f32 0.0, %v1501
  %v1503 = vpop.f32.mrf.mxu0
  %1504 = vmatprep.mubr.f32.mxu0 0.0
  %1505 = vmatmul.mubr.f32.gmra.mxu0 %v1327
  %v1506 = vpop.f32.mrf.mxu0
  %v1507 = vadd.f32 0.0, %v1506
  %v1508 = vpop.f32.mrf.mxu0
  %1509 = vmatprep.mubr.f32.mxu0 0.0
  %1510 = vmatmul.mubr.f32.gmra.mxu0 %v1328
  %v1511 = vpop.f32.mrf.mxu0
  %v1512 = vadd.f32 0.0, %v1511
  %v1513 = vpop.f32.mrf.mxu0
  %1514 = vmatprep.mubr.f32.mxu0 0.0
  %1515 = vmatmul.mubr.f32.gmra.mxu0 %v1329
  %v1516 = vpop.f32.mrf.mxu0
  %v1517 = vadd.f32 0.0, %v1516
  %v1518 = vpop.f32.mrf.mxu0
  %1519 = vmatprep.mubr.f32.mxu0 0.0
  %1520 = vmatmul.mubr.f32.gmra.mxu0 %v1330
  %v1521 = vpop.f32.mrf.mxu0
  %v1522 = vadd.f32 0.0, %v1521
  %v1523 = vpop.f32.mrf.mxu0
  %1524 = vmatprep.mubr.f32.mxu0 0.0
  %1525 = vmatmul.mubr.f32.gmra.mxu0 %v1331
  %v1526 = vpop.f32.mrf.mxu0
  %v1527 = vadd.f32 0.0, %v1526
  %v1528 = vpop.f32.mrf.mxu0
  %1529 = vmatprep.mubr.f32.mxu0 0.0
  %1530 = vmatmul.mubr.f32.gmra.mxu0 %v1332
  %v1531 = vpop.f32.mrf.mxu0
  %v1532 = vadd.f32 0.0, %v1531
  %v1533 = vpop.f32.mrf.mxu0
  %1534 = vmatprep.mubr.f32.mxu0 0.0
  %1535 = vmatmul.mubr.f32.gmra.mxu0 %v1333
  %v1536 = vpop.f32.mrf.mxu0
  %v1537 = vadd.f32 0.0, %v1536
  %v1538 = vpop.f32.mrf.mxu0
  %1539 = vdwg.mxu0
  %v1540 = vld [vmem:[%s5] sm:$0x1]
  %v1542 = vlaneseq
  %v1543 = vshrl.u32 %v1542, 7
  %v1544 = vsub.s32 0, %v1543
  %v1545 = vrot.slane %v1540, %v1544
  %1547 = vmatprep.subr.mxu0 0.0
  %1548 = vmatpush1.msra.mxu0 %v1492
  %1549 = vmatprep.subr.mxu0 0.0
  %1550 = vmatpush1.msra.mxu0 %v1487
  %1551 = vmatprep.subr.mxu0 0.0
  %1552 = vmatpush1.msra.mxu0 %v1482
  %1553 = vmatprep.subr.mxu0 0.0
  %1554 = vmatpush1.msra.mxu0 %v1477
  %1555 = vmatprep.subr.mxu0 0.0
  %1556 = vmatpush1.msra.mxu0 %v1472
  %1557 = vmatprep.subr.mxu0 0.0
  %1558 = vmatpush1.msra.mxu0 %v1467
  %1559 = vmatprep.subr.mxu0 0.0
  %1560 = vmatpush1.msra.mxu0 %v1462
  %1561 = vmatprep.subr.mxu0 0.0
  %1562 = vmatpush1.msra.mxu0 %v1457
  %1563 = vmatprep.subr.mxu0 0.0
  %1564 = vmatpush1.msra.mxu0 %v1452
  %1565 = vmatprep.subr.mxu0 0.0
  %1566 = vmatpush1.msra.mxu0 %v1447
  %1567 = vmatprep.subr.mxu0 0.0
  %1568 = vmatpush1.msra.mxu0 %v1442
  %1569 = vmatprep.subr.mxu0 0.0
  %1570 = vmatpush1.msra.mxu0 %v1437
  %1571 = vmatprep.subr.mxu0 0.0
  %1572 = vmatpush1.msra.mxu0 %v1432
  %1573 = vmatprep.subr.mxu0 0.0
  %1574 = vmatpush1.msra.mxu0 %v1427
  %1575 = vmatprep.subr.mxu0 0.0
  %1576 = vmatpush1.msra.mxu0 %v1422
  %1577 = vmatprep.subr.mxu0 0.0
  %1578 = vmatpush1.msra.mxu0 %v1417
  %1579 = vmatprep.subr.mxu0 0.0
  %1580 = vmatpush2.msra.mxu0 0.0
  %1581 = vmatprep.subr.mxu0 0.0
  %1582 = vmatpush2.msra.mxu0 0.0
  %1583 = vmatprep.subr.mxu0 0.0
  %1584 = vmatpush2.msra.mxu0 0.0
  %1585 = vmatprep.subr.mxu0 0.0
  %1586 = vmatpush2.msra.mxu0 0.0
  %1587 = vmatprep.subr.mxu0 0.0
  %1588 = vmatpush2.msra.mxu0 0.0
  %1589 = vmatprep.subr.mxu0 0.0
  %1590 = vmatpush2.msra.mxu0 0.0
  %1591 = vmatprep.subr.mxu0 0.0
  %1592 = vmatpush2.msra.mxu0 0.0
  %1593 = vmatprep.subr.mxu0 0.0
  %1594 = vmatpush2.msra.mxu0 %v1537
  %1595 = vmatprep.subr.mxu0 0.0
  %1596 = vmatpush2.msra.mxu0 %v1532
  %1597 = vmatprep.subr.mxu0 0.0
  %1598 = vmatpush2.msra.mxu0 %v1527
  %1599 = vmatprep.subr.mxu0 0.0
  %1600 = vmatpush2.msra.mxu0 %v1522
  %1601 = vmatprep.subr.mxu0 0.0
  %1602 = vmatpush2.msra.mxu0 %v1517
  %1603 = vmatprep.subr.mxu0 0.0
  %1604 = vmatpush2.msra.mxu0 %v1512
  %1605 = vmatprep.subr.mxu0 0.0
  %1606 = vmatpush2.msra.mxu0 %v1507
  %1607 = vmatprep.subr.mxu0 0.0
  %1608 = vmatpush2.msra.mxu0 %v1502
  %1609 = vmatprep.subr.mxu0 0.0
  %1610 = vmatpush2.msra.mxu0 %v1497
  %1611 = vmatprep.mubr.f32.mxu0 %v1045
  %1612 = vmatmul.mubr.f32.gmra.mxu0 %v647
  %v1613 = vpop.f32.mrf.mxu0
  %v1614 = vadd.f32 %v1545, %v1613
  %v1615 = vpop.f32.mrf.mxu0
  %1616 = vmatprep.mubr.f32.mxu0 %v1048
  %1617 = vmatmul.mubr.f32.gmra.mxu0 %v649
  %v1618 = vpop.f32.mrf.mxu0
  %v1619 = vadd.f32 %v1545, %v1618
  %v1620 = vpop.f32.mrf.mxu0
  %1621 = vmatprep.mubr.f32.mxu0 %v1051
  %1622 = vmatmul.mubr.f32.gmra.mxu0 %v651
  %v1623 = vpop.f32.mrf.mxu0
  %v1624 = vadd.f32 %v1545, %v1623
  %v1625 = vpop.f32.mrf.mxu0
  %1626 = vmatprep.mubr.f32.mxu0 %v1054
  %1627 = vmatmul.mubr.f32.gmra.mxu0 %v653
  %v1628 = vpop.f32.mrf.mxu0
  %v1629 = vadd.f32 %v1545, %v1628
  %v1630 = vpop.f32.mrf.mxu0
  %1631 = vmatprep.mubr.f32.mxu0 %v1057
  %1632 = vmatmul.mubr.f32.gmra.mxu0 %v655
  %v1633 = vpop.f32.mrf.mxu0
  %v1634 = vadd.f32 %v1545, %v1633
  %v1635 = vpop.f32.mrf.mxu0
  %1636 = vmatprep.mubr.f32.mxu0 %v1060
  %1637 = vmatmul.mubr.f32.gmra.mxu0 %v657
  %v1638 = vpop.f32.mrf.mxu0
  %v1639 = vadd.f32 %v1545, %v1638
  %v1640 = vpop.f32.mrf.mxu0
  %1641 = vmatprep.mubr.f32.mxu0 %v1063
  %1642 = vmatmul.mubr.f32.gmra.mxu0 %v659
  %v1643 = vpop.f32.mrf.mxu0
  %v1644 = vadd.f32 %v1545, %v1643
  %v1645 = vpop.f32.mrf.mxu0
  %1646 = vmatprep.mubr.f32.mxu0 %v1066
  %1647 = vmatmul.mubr.f32.gmra.mxu0 %v661
  %v1648 = vpop.f32.mrf.mxu0
  %v1649 = vadd.f32 %v1545, %v1648
  %v1650 = vpop.f32.mrf.mxu0
  %1651 = vmatprep.mubr.f32.mxu0 %v1069
  %1652 = vmatmul.mubr.f32.gmra.mxu0 %v663
  %v1653 = vpop.f32.mrf.mxu0
  %v1654 = vadd.f32 %v1545, %v1653
  %v1655 = vpop.f32.mrf.mxu0
  %1656 = vmatprep.mubr.f32.mxu0 %v1072
  %1657 = vmatmul.mubr.f32.gmra.mxu0 %v665
  %v1658 = vpop.f32.mrf.mxu0
  %v1659 = vadd.f32 %v1545, %v1658
  %v1660 = vpop.f32.mrf.mxu0
  %1661 = vmatprep.mubr.f32.mxu0 %v1075
  %1662 = vmatmul.mubr.f32.gmra.mxu0 %v667
  %v1663 = vpop.f32.mrf.mxu0
  %v1664 = vadd.f32 %v1545, %v1663
  %v1665 = vpop.f32.mrf.mxu0
  %1666 = vmatprep.mubr.f32.mxu0 %v1078
  %1667 = vmatmul.mubr.f32.gmra.mxu0 %v669
  %v1668 = vpop.f32.mrf.mxu0
  %v1669 = vadd.f32 %v1545, %v1668
  %v1670 = vpop.f32.mrf.mxu0
  %1671 = vmatprep.mubr.f32.mxu0 %v1081
  %1672 = vmatmul.mubr.f32.gmra.mxu0 %v671
  %v1673 = vpop.f32.mrf.mxu0
  %v1674 = vadd.f32 %v1545, %v1673
  %v1675 = vpop.f32.mrf.mxu0
  %1676 = vmatprep.mubr.f32.mxu0 %v1084
  %1677 = vmatmul.mubr.f32.gmra.mxu0 %v673
  %v1678 = vpop.f32.mrf.mxu0
  %v1679 = vadd.f32 %v1545, %v1678
  %v1680 = vpop.f32.mrf.mxu0
  %1681 = vmatprep.mubr.f32.mxu0 %v1087
  %1682 = vmatmul.mubr.f32.gmra.mxu0 %v675
  %v1683 = vpop.f32.mrf.mxu0
  %v1684 = vadd.f32 %v1545, %v1683
  %v1685 = vpop.f32.mrf.mxu0
  %1686 = vmatprep.mubr.f32.mxu0 %v1090
  %1687 = vmatmul.mubr.f32.gmra.mxu0 %v677
  %v1688 = vpop.f32.mrf.mxu0
  %v1689 = vadd.f32 %v1545, %v1688
  %v1690 = vpop.f32.mrf.mxu0
  %1691 = vmatprep.mubr.f32.mxu0 %v1093
  %1692 = vmatmul.mubr.f32.gmra.mxu0 %v679
  %v1693 = vpop.f32.mrf.mxu0
  %v1694 = vadd.f32 %v1545, %v1693
  %v1695 = vpop.f32.mrf.mxu0
  %1696 = vmatprep.mubr.f32.mxu0 %v1096
  %1697 = vmatmul.mubr.f32.gmra.mxu0 %v681
  %v1698 = vpop.f32.mrf.mxu0
  %v1699 = vadd.f32 %v1545, %v1698
  %v1700 = vpop.f32.mrf.mxu0
  %1701 = vmatprep.mubr.f32.mxu0 %v1099
  %1702 = vmatmul.mubr.f32.gmra.mxu0 %v683
  %v1703 = vpop.f32.mrf.mxu0
  %v1704 = vadd.f32 %v1545, %v1703
  %v1705 = vpop.f32.mrf.mxu0
  %1706 = vmatprep.mubr.f32.mxu0 %v1102
  %1707 = vmatmul.mubr.f32.gmra.mxu0 %v685
  %v1708 = vpop.f32.mrf.mxu0
  %v1709 = vadd.f32 %v1545, %v1708
  %v1710 = vpop.f32.mrf.mxu0
  %1711 = vmatprep.mubr.f32.mxu0 %v1105
  %1712 = vmatmul.mubr.f32.gmra.mxu0 %v687
  %v1713 = vpop.f32.mrf.mxu0
  %v1714 = vadd.f32 %v1545, %v1713
  %v1715 = vpop.f32.mrf.mxu0
  %1716 = vmatprep.mubr.f32.mxu0 %v1108
  %1717 = vmatmul.mubr.f32.gmra.mxu0 %v689
  %v1718 = vpop.f32.mrf.mxu0
  %v1719 = vadd.f32 %v1545, %v1718
  %v1720 = vpop.f32.mrf.mxu0
  %1721 = vmatprep.mubr.f32.mxu0 %v1111
  %1722 = vmatmul.mubr.f32.gmra.mxu0 %v691
  %v1723 = vpop.f32.mrf.mxu0
  %v1724 = vadd.f32 %v1545, %v1723
  %v1725 = vpop.f32.mrf.mxu0
  %1726 = vmatprep.mubr.f32.mxu0 %v1114
  %1727 = vmatmul.mubr.f32.gmra.mxu0 %v693
  %v1728 = vpop.f32.mrf.mxu0
  %v1729 = vadd.f32 %v1545, %v1728
  %v1730 = vpop.f32.mrf.mxu0
  %1731 = vmatprep.mubr.f32.mxu0 %v1117
  %1732 = vmatmul.mubr.f32.gmra.mxu0 %v695
  %v1733 = vpop.f32.mrf.mxu0
  %v1734 = vadd.f32 %v1545, %v1733
  %v1735 = vpop.f32.mrf.mxu0
  %1736 = vdwg.mxu0
  %v1737 = vmax.f32 %v1614, 0.0
  %v1738 = vmax.f32 %v1619, 0.0
  %v1739 = vmax.f32 %v1624, 0.0
  %v1740 = vmax.f32 %v1629, 0.0
  %v1741 = vmax.f32 %v1634, 0.0
  %v1742 = vmax.f32 %v1639, 0.0
  %v1743 = vmax.f32 %v1644, 0.0
  %v1744 = vmax.f32 %v1649, 0.0
  %v1745 = vmax.f32 %v1654, 0.0
  %v1746 = vmax.f32 %v1659, 0.0
  %v1747 = vmax.f32 %v1664, 0.0
  %v1748 = vmax.f32 %v1669, 0.0
  %v1749 = vmax.f32 %v1674, 0.0
  %v1750 = vmax.f32 %v1679, 0.0
  %v1751 = vmax.f32 %v1684, 0.0
  %v1752 = vmax.f32 %v1689, 0.0
  %v1753 = vmax.f32 %v1694, 0.0
  %v1754 = vmax.f32 %v1699, 0.0
  %v1755 = vmax.f32 %v1704, 0.0
  %v1756 = vmax.f32 %v1709, 0.0
  %v1757 = vmax.f32 %v1714, 0.0
  %v1758 = vmax.f32 %v1719, 0.0
  %v1759 = vmax.f32 %v1724, 0.0
  %v1760 = vmax.f32 %v1729, 0.0
  %v1761 = vmax.f32 %v1734, 0.0
  %v1762 = vld [vmem:[%s6] sm:$0xff]
  %v1763 = vld [vmem:[%s6 + $0x8] sm:$0xff]
  %v1764 = vld [vmem:[%s6 + $0x10] sm:$0xff]
  %v1765 = vld [vmem:[%s6 + $0x18] sm:$0xff]
  %v1766 = vld [vmem:[%s6 + $0x20] sm:$0xff]
  %v1767 = vld [vmem:[%s6 + $0x28] sm:$0xff]
  %v1768 = vld [vmem:[%s6 + $0x30] sm:$0xff]
  %v1769 = vld [vmem:[%s6 + $0x38] sm:$0xff]
  %v1770 = vld [vmem:[%s6 + $0x40] sm:$0xff]
  %v1771 = vld [vmem:[%s6 + $0x48] sm:$0xff]
  %v1772 = vld [vmem:[%s6 + $0x50] sm:$0xff]
  %v1773 = vld [vmem:[%s6 + $0x58] sm:$0xff]
  %v1774 = vld [vmem:[%s6 + $0x60] sm:$0xff]
  %v1775 = vld [vmem:[%s6 + $0x68] sm:$0xff]
  %v1776 = vld [vmem:[%s6 + $0x70] sm:$0xff]
  %v1777 = vld [vmem:[%s6 + $0x78] sm:$0xff]
  %1778 = vmatprep.subr.mxu0 0.0
  %1779 = vmatpush1.msra.mxu0 %v1777
  %1780 = vmatprep.subr.mxu0 0.0
  %1781 = vmatpush1.msra.mxu0 %v1776
  %1782 = vmatprep.subr.mxu0 0.0
  %1783 = vmatpush1.msra.mxu0 %v1775
  %1784 = vmatprep.subr.mxu0 0.0
  %1785 = vmatpush1.msra.mxu0 %v1774
  %1786 = vmatprep.subr.mxu0 0.0
  %1787 = vmatpush1.msra.mxu0 %v1773
  %1788 = vmatprep.subr.mxu0 0.0
  %1789 = vmatpush1.msra.mxu0 %v1772
  %1790 = vmatprep.subr.mxu0 0.0
  %1791 = vmatpush1.msra.mxu0 %v1771
  %1792 = vmatprep.subr.mxu0 0.0
  %1793 = vmatpush1.msra.mxu0 %v1770
  %1794 = vmatprep.subr.mxu0 0.0
  %1795 = vmatpush1.msra.mxu0 %v1769
  %1796 = vmatprep.subr.mxu0 0.0
  %1797 = vmatpush1.msra.mxu0 %v1768
  %1798 = vmatprep.subr.mxu0 0.0
  %1799 = vmatpush1.msra.mxu0 %v1767
  %1800 = vmatprep.subr.mxu0 0.0
  %1801 = vmatpush1.msra.mxu0 %v1766
  %1802 = vmatprep.subr.mxu0 0.0
  %1803 = vmatpush1.msra.mxu0 %v1765
  %1804 = vmatprep.subr.mxu0 0.0
  %1805 = vmatpush1.msra.mxu0 %v1764
  %1806 = vmatprep.subr.mxu0 0.0
  %1807 = vmatpush1.msra.mxu0 %v1763
  %1808 = vmatprep.subr.mxu0 0.0
  %1809 = vmatpush1.msra.mxu0 %v1762
  %1810 = vmatprep.subr.mxu0 0.0
  %1811 = vmatpush2.msra.mxu0 0.0
  %1812 = vmatprep.subr.mxu0 0.0
  %1813 = vmatpush2.msra.mxu0 0.0
  %1814 = vmatprep.subr.mxu0 0.0
  %1815 = vmatpush2.msra.mxu0 0.0
  %1816 = vmatprep.subr.mxu0 0.0
  %1817 = vmatpush2.msra.mxu0 0.0
  %1818 = vmatprep.subr.mxu0 0.0
  %1819 = vmatpush2.msra.mxu0 0.0
  %1820 = vmatprep.subr.mxu0 0.0
  %1821 = vmatpush2.msra.mxu0 0.0
  %1822 = vmatprep.subr.mxu0 0.0
  %1823 = vmatpush2.msra.mxu0 0.0
  %1824 = vmatprep.subr.mxu0 0.0
  %1825 = vmatpush2.msra.mxu0 0.0
  %1826 = vmatprep.subr.mxu0 0.0
  %1827 = vmatpush2.msra.mxu0 0.0
  %1828 = vmatprep.subr.mxu0 0.0
  %1829 = vmatpush2.msra.mxu0 0.0
  %1830 = vmatprep.subr.mxu0 0.0
  %1831 = vmatpush2.msra.mxu0 0.0
  %1832 = vmatprep.subr.mxu0 0.0
  %1833 = vmatpush2.msra.mxu0 0.0
  %1834 = vmatprep.subr.mxu0 0.0
  %1835 = vmatpush2.msra.mxu0 0.0
  %1836 = vmatprep.subr.mxu0 0.0
  %1837 = vmatpush2.msra.mxu0 0.0
  %1838 = vmatprep.subr.mxu0 0.0
  %1839 = vmatpush2.msra.mxu0 0.0
  %1840 = vmatprep.subr.mxu0 0.0
  %1841 = vmatpush2.msra.mxu0 0.0
  %1842 = vmatprep.mubr.f32.mxu0 0.0
  %1843 = vmatmul.mubr.f32.gmra.mxu0 %v1737
  %v1844 = vpop.f32.mrf.mxu0
  %v1845 = vadd.f32 0.0, %v1844
  %v1846 = vpop.f32.mrf.mxu0
  %1847 = vmatprep.mubr.f32.mxu0 0.0
  %1848 = vmatmul.mubr.f32.gmra.mxu0 %v1738
  %v1849 = vpop.f32.mrf.mxu0
  %v1850 = vadd.f32 0.0, %v1849
  %v1851 = vpop.f32.mrf.mxu0
  %1852 = vmatprep.mubr.f32.mxu0 0.0
  %1853 = vmatmul.mubr.f32.gmra.mxu0 %v1739
  %v1854 = vpop.f32.mrf.mxu0
  %v1855 = vadd.f32 0.0, %v1854
  %v1856 = vpop.f32.mrf.mxu0
  %1857 = vmatprep.mubr.f32.mxu0 0.0
  %1858 = vmatmul.mubr.f32.gmra.mxu0 %v1740
  %v1859 = vpop.f32.mrf.mxu0
  %v1860 = vadd.f32 0.0, %v1859
  %v1861 = vpop.f32.mrf.mxu0
  %1862 = vmatprep.mubr.f32.mxu0 0.0
  %1863 = vmatmul.mubr.f32.gmra.mxu0 %v1741
  %v1864 = vpop.f32.mrf.mxu0
  %v1865 = vadd.f32 0.0, %v1864
  %v1866 = vpop.f32.mrf.mxu0
  %1867 = vmatprep.mubr.f32.mxu0 0.0
  %1868 = vmatmul.mubr.f32.gmra.mxu0 %v1742
  %v1869 = vpop.f32.mrf.mxu0
  %v1870 = vadd.f32 0.0, %v1869
  %v1871 = vpop.f32.mrf.mxu0
  %1872 = vmatprep.mubr.f32.mxu0 0.0
  %1873 = vmatmul.mubr.f32.gmra.mxu0 %v1743
  %v1874 = vpop.f32.mrf.mxu0
  %v1875 = vadd.f32 0.0, %v1874
  %v1876 = vpop.f32.mrf.mxu0
  %1877 = vmatprep.mubr.f32.mxu0 0.0
  %1878 = vmatmul.mubr.f32.gmra.mxu0 %v1744
  %v1879 = vpop.f32.mrf.mxu0
  %v1880 = vadd.f32 0.0, %v1879
  %v1881 = vpop.f32.mrf.mxu0
  %1882 = vmatprep.mubr.f32.mxu0 0.0
  %1883 = vmatmul.mubr.f32.gmra.mxu0 %v1745
  %v1884 = vpop.f32.mrf.mxu0
  %v1885 = vadd.f32 0.0, %v1884
  %v1886 = vpop.f32.mrf.mxu0
  %1887 = vmatprep.mubr.f32.mxu0 0.0
  %1888 = vmatmul.mubr.f32.gmra.mxu0 %v1746
  %v1889 = vpop.f32.mrf.mxu0
  %v1890 = vadd.f32 0.0, %v1889
  %v1891 = vpop.f32.mrf.mxu0
  %1892 = vmatprep.mubr.f32.mxu0 0.0
  %1893 = vmatmul.mubr.f32.gmra.mxu0 %v1747
  %v1894 = vpop.f32.mrf.mxu0
  %v1895 = vadd.f32 0.0, %v1894
  %v1896 = vpop.f32.mrf.mxu0
  %1897 = vmatprep.mubr.f32.mxu0 0.0
  %1898 = vmatmul.mubr.f32.gmra.mxu0 %v1748
  %v1899 = vpop.f32.mrf.mxu0
  %v1900 = vadd.f32 0.0, %v1899
  %v1901 = vpop.f32.mrf.mxu0
  %1902 = vmatprep.mubr.f32.mxu0 0.0
  %1903 = vmatmul.mubr.f32.gmra.mxu0 %v1749
  %v1904 = vpop.f32.mrf.mxu0
  %v1905 = vadd.f32 0.0, %v1904
  %v1906 = vpop.f32.mrf.mxu0
  %1907 = vmatprep.mubr.f32.mxu0 0.0
  %1908 = vmatmul.mubr.f32.gmra.mxu0 %v1750
  %v1909 = vpop.f32.mrf.mxu0
  %v1910 = vadd.f32 0.0, %v1909
  %v1911 = vpop.f32.mrf.mxu0
  %1912 = vmatprep.mubr.f32.mxu0 0.0
  %1913 = vmatmul.mubr.f32.gmra.mxu0 %v1751
  %v1914 = vpop.f32.mrf.mxu0
  %v1915 = vadd.f32 0.0, %v1914
  %v1916 = vpop.f32.mrf.mxu0
  %1917 = vmatprep.mubr.f32.mxu0 0.0
  %1918 = vmatmul.mubr.f32.gmra.mxu0 %v1752
  %v1919 = vpop.f32.mrf.mxu0
  %v1920 = vadd.f32 0.0, %v1919
  %v1921 = vpop.f32.mrf.mxu0
  %1922 = vmatprep.mubr.f32.mxu0 0.0
  %1923 = vmatmul.mubr.f32.gmra.mxu0 %v1753
  %v1924 = vpop.f32.mrf.mxu0
  %v1925 = vadd.f32 0.0, %v1924
  %v1926 = vpop.f32.mrf.mxu0
  %1927 = vmatprep.mubr.f32.mxu0 0.0
  %1928 = vmatmul.mubr.f32.gmra.mxu0 %v1754
  %v1929 = vpop.f32.mrf.mxu0
  %v1930 = vadd.f32 0.0, %v1929
  %v1931 = vpop.f32.mrf.mxu0
  %1932 = vmatprep.mubr.f32.mxu0 0.0
  %1933 = vmatmul.mubr.f32.gmra.mxu0 %v1755
  %v1934 = vpop.f32.mrf.mxu0
  %v1935 = vadd.f32 0.0, %v1934
  %v1936 = vpop.f32.mrf.mxu0
  %1937 = vmatprep.mubr.f32.mxu0 0.0
  %1938 = vmatmul.mubr.f32.gmra.mxu0 %v1756
  %v1939 = vpop.f32.mrf.mxu0
  %v1940 = vadd.f32 0.0, %v1939
  %v1941 = vpop.f32.mrf.mxu0
  %1942 = vmatprep.mubr.f32.mxu0 0.0
  %1943 = vmatmul.mubr.f32.gmra.mxu0 %v1757
  %v1944 = vpop.f32.mrf.mxu0
  %v1945 = vadd.f32 0.0, %v1944
  %v1946 = vpop.f32.mrf.mxu0
  %1947 = vmatprep.mubr.f32.mxu0 0.0
  %1948 = vmatmul.mubr.f32.gmra.mxu0 %v1758
  %v1949 = vpop.f32.mrf.mxu0
  %v1950 = vadd.f32 0.0, %v1949
  %v1951 = vpop.f32.mrf.mxu0
  %1952 = vmatprep.mubr.f32.mxu0 0.0
  %1953 = vmatmul.mubr.f32.gmra.mxu0 %v1759
  %v1954 = vpop.f32.mrf.mxu0
  %v1955 = vadd.f32 0.0, %v1954
  %v1956 = vpop.f32.mrf.mxu0
  %1957 = vmatprep.mubr.f32.mxu0 0.0
  %1958 = vmatmul.mubr.f32.gmra.mxu0 %v1760
  %v1959 = vpop.f32.mrf.mxu0
  %v1960 = vadd.f32 0.0, %v1959
  %v1961 = vpop.f32.mrf.mxu0
  %1962 = vmatprep.mubr.f32.mxu0 0.0
  %1963 = vmatmul.mubr.f32.gmra.mxu0 %v1761
  %v1964 = vpop.f32.mrf.mxu0
  %v1965 = vadd.f32 0.0, %v1964
  %v1966 = vpop.f32.mrf.mxu0
  %1967 = vdwg.mxu0
  %v1968 = vld [vmem:[%s7] sm:$0x1]
  %v1970 = vlaneseq
  %v1971 = vshrl.u32 %v1970, 7
  %v1972 = vsub.s32 0, %v1971
  %v1973 = vrot.slane %v1968, %v1972
  %1975 = vmatprep.subr.mxu0 0.0
  %1976 = vmatpush1.msra.mxu0 %v1920
  %1977 = vmatprep.subr.mxu0 0.0
  %1978 = vmatpush1.msra.mxu0 %v1915
  %1979 = vmatprep.subr.mxu0 0.0
  %1980 = vmatpush1.msra.mxu0 %v1910
  %1981 = vmatprep.subr.mxu0 0.0
  %1982 = vmatpush1.msra.mxu0 %v1905
  %1983 = vmatprep.subr.mxu0 0.0
  %1984 = vmatpush1.msra.mxu0 %v1900
  %1985 = vmatprep.subr.mxu0 0.0
  %1986 = vmatpush1.msra.mxu0 %v1895
  %1987 = vmatprep.subr.mxu0 0.0
  %1988 = vmatpush1.msra.mxu0 %v1890
  %1989 = vmatprep.subr.mxu0 0.0
  %1990 = vmatpush1.msra.mxu0 %v1885
  %1991 = vmatprep.subr.mxu0 0.0
  %1992 = vmatpush1.msra.mxu0 %v1880
  %1993 = vmatprep.subr.mxu0 0.0
  %1994 = vmatpush1.msra.mxu0 %v1875
  %1995 = vmatprep.subr.mxu0 0.0
  %1996 = vmatpush1.msra.mxu0 %v1870
  %1997 = vmatprep.subr.mxu0 0.0
  %1998 = vmatpush1.msra.mxu0 %v1865
  %1999 = vmatprep.subr.mxu0 0.0
  %2000 = vmatpush1.msra.mxu0 %v1860
  %2001 = vmatprep.subr.mxu0 0.0
  %2002 = vmatpush1.msra.mxu0 %v1855
  %2003 = vmatprep.subr.mxu0 0.0
  %2004 = vmatpush1.msra.mxu0 %v1850
  %2005 = vmatprep.subr.mxu0 0.0
  %2006 = vmatpush1.msra.mxu0 %v1845
  %2007 = vmatprep.subr.mxu0 0.0
  %2008 = vmatpush2.msra.mxu0 0.0
  %2009 = vmatprep.subr.mxu0 0.0
  %2010 = vmatpush2.msra.mxu0 0.0
  %2011 = vmatprep.subr.mxu0 0.0
  %2012 = vmatpush2.msra.mxu0 0.0
  %2013 = vmatprep.subr.mxu0 0.0
  %2014 = vmatpush2.msra.mxu0 0.0
  %2015 = vmatprep.subr.mxu0 0.0
  %2016 = vmatpush2.msra.mxu0 0.0
  %2017 = vmatprep.subr.mxu0 0.0
  %2018 = vmatpush2.msra.mxu0 0.0
  %2019 = vmatprep.subr.mxu0 0.0
  %2020 = vmatpush2.msra.mxu0 0.0
  %2021 = vmatprep.subr.mxu0 0.0
  %2022 = vmatpush2.msra.mxu0 %v1965
  %2023 = vmatprep.subr.mxu0 0.0
  %2024 = vmatpush2.msra.mxu0 %v1960
  %2025 = vmatprep.subr.mxu0 0.0
  %2026 = vmatpush2.msra.mxu0 %v1955
  %2027 = vmatprep.subr.mxu0 0.0
  %2028 = vmatpush2.msra.mxu0 %v1950
  %2029 = vmatprep.subr.mxu0 0.0
  %2030 = vmatpush2.msra.mxu0 %v1945
  %2031 = vmatprep.subr.mxu0 0.0
  %2032 = vmatpush2.msra.mxu0 %v1940
  %2033 = vmatprep.subr.mxu0 0.0
  %2034 = vmatpush2.msra.mxu0 %v1935
  %2035 = vmatprep.subr.mxu0 0.0
  %2036 = vmatpush2.msra.mxu0 %v1930
  %2037 = vmatprep.subr.mxu0 0.0
  %2038 = vmatpush2.msra.mxu0 %v1925
  %2039 = vmatprep.mubr.f32.mxu0 %v1045
  %2040 = vmatmul.mubr.f32.gmra.mxu0 %v647
  %v2041 = vpop.f32.mrf.mxu0
  %v2042 = vadd.f32 %v1973, %v2041
  %v2043 = vpop.f32.mrf.mxu0
  %2044 = vmatprep.mubr.f32.mxu0 %v1048
  %2045 = vmatmul.mubr.f32.gmra.mxu0 %v649
  %v2046 = vpop.f32.mrf.mxu0
  %v2047 = vadd.f32 %v1973, %v2046
  %v2048 = vpop.f32.mrf.mxu0
  %2049 = vmatprep.mubr.f32.mxu0 %v1051
  %2050 = vmatmul.mubr.f32.gmra.mxu0 %v651
  %v2051 = vpop.f32.mrf.mxu0
  %v2052 = vadd.f32 %v1973, %v2051
  %v2053 = vpop.f32.mrf.mxu0
  %2054 = vmatprep.mubr.f32.mxu0 %v1054
  %2055 = vmatmul.mubr.f32.gmra.mxu0 %v653
  %v2056 = vpop.f32.mrf.mxu0
  %v2057 = vadd.f32 %v1973, %v2056
  %v2058 = vpop.f32.mrf.mxu0
  %2059 = vmatprep.mubr.f32.mxu0 %v1057
  %2060 = vmatmul.mubr.f32.gmra.mxu0 %v655
  %v2061 = vpop.f32.mrf.mxu0
  %v2062 = vadd.f32 %v1973, %v2061
  %v2063 = vpop.f32.mrf.mxu0
  %2064 = vmatprep.mubr.f32.mxu0 %v1060
  %2065 = vmatmul.mubr.f32.gmra.mxu0 %v657
  %v2066 = vpop.f32.mrf.mxu0
  %v2067 = vadd.f32 %v1973, %v2066
  %v2068 = vpop.f32.mrf.mxu0
  %2069 = vmatprep.mubr.f32.mxu0 %v1063
  %2070 = vmatmul.mubr.f32.gmra.mxu0 %v659
  %v2071 = vpop.f32.mrf.mxu0
  %v2072 = vadd.f32 %v1973, %v2071
  %v2073 = vpop.f32.mrf.mxu0
  %2074 = vmatprep.mubr.f32.mxu0 %v1066
  %2075 = vmatmul.mubr.f32.gmra.mxu0 %v661
  %v2076 = vpop.f32.mrf.mxu0
  %v2077 = vadd.f32 %v1973, %v2076
  %v2078 = vpop.f32.mrf.mxu0
  %2079 = vmatprep.mubr.f32.mxu0 %v1069
  %2080 = vmatmul.mubr.f32.gmra.mxu0 %v663
  %v2081 = vpop.f32.mrf.mxu0
  %v2082 = vadd.f32 %v1973, %v2081
  %v2083 = vpop.f32.mrf.mxu0
  %2084 = vmatprep.mubr.f32.mxu0 %v1072
  %2085 = vmatmul.mubr.f32.gmra.mxu0 %v665
  %v2086 = vpop.f32.mrf.mxu0
  %v2087 = vadd.f32 %v1973, %v2086
  %v2088 = vpop.f32.mrf.mxu0
  %2089 = vmatprep.mubr.f32.mxu0 %v1075
  %2090 = vmatmul.mubr.f32.gmra.mxu0 %v667
  %v2091 = vpop.f32.mrf.mxu0
  %v2092 = vadd.f32 %v1973, %v2091
  %v2093 = vpop.f32.mrf.mxu0
  %2094 = vmatprep.mubr.f32.mxu0 %v1078
  %2095 = vmatmul.mubr.f32.gmra.mxu0 %v669
  %v2096 = vpop.f32.mrf.mxu0
  %v2097 = vadd.f32 %v1973, %v2096
  %v2098 = vpop.f32.mrf.mxu0
  %2099 = vmatprep.mubr.f32.mxu0 %v1081
  %2100 = vmatmul.mubr.f32.gmra.mxu0 %v671
  %v2101 = vpop.f32.mrf.mxu0
  %v2102 = vadd.f32 %v1973, %v2101
  %v2103 = vpop.f32.mrf.mxu0
  %2104 = vmatprep.mubr.f32.mxu0 %v1084
  %2105 = vmatmul.mubr.f32.gmra.mxu0 %v673
  %v2106 = vpop.f32.mrf.mxu0
  %v2107 = vadd.f32 %v1973, %v2106
  %v2108 = vpop.f32.mrf.mxu0
  %2109 = vmatprep.mubr.f32.mxu0 %v1087
  %2110 = vmatmul.mubr.f32.gmra.mxu0 %v675
  %v2111 = vpop.f32.mrf.mxu0
  %v2112 = vadd.f32 %v1973, %v2111
  %v2113 = vpop.f32.mrf.mxu0
  %2114 = vmatprep.mubr.f32.mxu0 %v1090
  %2115 = vmatmul.mubr.f32.gmra.mxu0 %v677
  %v2116 = vpop.f32.mrf.mxu0
  %v2117 = vadd.f32 %v1973, %v2116
  %v2118 = vpop.f32.mrf.mxu0
  %2119 = vmatprep.mubr.f32.mxu0 %v1093
  %2120 = vmatmul.mubr.f32.gmra.mxu0 %v679
  %v2121 = vpop.f32.mrf.mxu0
  %v2122 = vadd.f32 %v1973, %v2121
  %v2123 = vpop.f32.mrf.mxu0
  %2124 = vmatprep.mubr.f32.mxu0 %v1096
  %2125 = vmatmul.mubr.f32.gmra.mxu0 %v681
  %v2126 = vpop.f32.mrf.mxu0
  %v2127 = vadd.f32 %v1973, %v2126
  %v2128 = vpop.f32.mrf.mxu0
  %2129 = vmatprep.mubr.f32.mxu0 %v1099
  %2130 = vmatmul.mubr.f32.gmra.mxu0 %v683
  %v2131 = vpop.f32.mrf.mxu0
  %v2132 = vadd.f32 %v1973, %v2131
  %v2133 = vpop.f32.mrf.mxu0
  %2134 = vmatprep.mubr.f32.mxu0 %v1102
  %2135 = vmatmul.mubr.f32.gmra.mxu0 %v685
  %v2136 = vpop.f32.mrf.mxu0
  %v2137 = vadd.f32 %v1973, %v2136
  %v2138 = vpop.f32.mrf.mxu0
  %2139 = vmatprep.mubr.f32.mxu0 %v1105
  %2140 = vmatmul.mubr.f32.gmra.mxu0 %v687
  %v2141 = vpop.f32.mrf.mxu0
  %v2142 = vadd.f32 %v1973, %v2141
  %v2143 = vpop.f32.mrf.mxu0
  %2144 = vmatprep.mubr.f32.mxu0 %v1108
  %2145 = vmatmul.mubr.f32.gmra.mxu0 %v689
  %v2146 = vpop.f32.mrf.mxu0
  %v2147 = vadd.f32 %v1973, %v2146
  %v2148 = vpop.f32.mrf.mxu0
  %2149 = vmatprep.mubr.f32.mxu0 %v1111
  %2150 = vmatmul.mubr.f32.gmra.mxu0 %v691
  %v2151 = vpop.f32.mrf.mxu0
  %v2152 = vadd.f32 %v1973, %v2151
  %v2153 = vpop.f32.mrf.mxu0
  %2154 = vmatprep.mubr.f32.mxu0 %v1114
  %2155 = vmatmul.mubr.f32.gmra.mxu0 %v693
  %v2156 = vpop.f32.mrf.mxu0
  %v2157 = vadd.f32 %v1973, %v2156
  %v2158 = vpop.f32.mrf.mxu0
  %2159 = vmatprep.mubr.f32.mxu0 %v1117
  %2160 = vmatmul.mubr.f32.gmra.mxu0 %v695
  %v2161 = vpop.f32.mrf.mxu0
  %v2162 = vadd.f32 %v1973, %v2161
  %v2163 = vpop.f32.mrf.mxu0
  %2164 = vdwg.mxu0
  %v2165 = vmax.f32 %v2042, 0.0
  %v2166 = vmax.f32 %v2047, 0.0
  %v2167 = vmax.f32 %v2052, 0.0
  %v2168 = vmax.f32 %v2057, 0.0
  %v2169 = vmax.f32 %v2062, 0.0
  %v2170 = vmax.f32 %v2067, 0.0
  %v2171 = vmax.f32 %v2072, 0.0
  %v2172 = vmax.f32 %v2077, 0.0
  %v2173 = vmax.f32 %v2082, 0.0
  %v2174 = vmax.f32 %v2087, 0.0
  %v2175 = vmax.f32 %v2092, 0.0
  %v2176 = vmax.f32 %v2097, 0.0
  %v2177 = vmax.f32 %v2102, 0.0
  %v2178 = vmax.f32 %v2107, 0.0
  %v2179 = vmax.f32 %v2112, 0.0
  %v2180 = vmax.f32 %v2117, 0.0
  %v2181 = vmax.f32 %v2122, 0.0
  %v2182 = vmax.f32 %v2127, 0.0
  %v2183 = vmax.f32 %v2132, 0.0
  %v2184 = vmax.f32 %v2137, 0.0
  %v2185 = vmax.f32 %v2142, 0.0
  %v2186 = vmax.f32 %v2147, 0.0
  %v2187 = vmax.f32 %v2152, 0.0
  %v2188 = vmax.f32 %v2157, 0.0
  %v2189 = vmax.f32 %v2162, 0.0
  %v2190 = vld [vmem:[%s8] sm:$0xff]
  %v2191 = vld [vmem:[%s8 + $0x8] sm:$0xff]
  %v2192 = vld [vmem:[%s8 + $0x10] sm:$0xff]
  %v2193 = vld [vmem:[%s8 + $0x18] sm:$0xff]
  %v2194 = vld [vmem:[%s8 + $0x20] sm:$0xff]
  %v2195 = vld [vmem:[%s8 + $0x28] sm:$0xff]
  %v2196 = vld [vmem:[%s8 + $0x30] sm:$0xff]
  %v2197 = vld [vmem:[%s8 + $0x38] sm:$0xff]
  %v2198 = vld [vmem:[%s8 + $0x40] sm:$0xff]
  %v2199 = vld [vmem:[%s8 + $0x48] sm:$0xff]
  %v2200 = vld [vmem:[%s8 + $0x50] sm:$0xff]
  %v2201 = vld [vmem:[%s8 + $0x58] sm:$0xff]
  %v2202 = vld [vmem:[%s8 + $0x60] sm:$0xff]
  %v2203 = vld [vmem:[%s8 + $0x68] sm:$0xff]
  %v2204 = vld [vmem:[%s8 + $0x70] sm:$0xff]
  %v2205 = vld [vmem:[%s8 + $0x78] sm:$0xff]
  %2206 = vmatprep.subr.mxu0 0.0
  %2207 = vmatpush1.msra.mxu0 %v2205
  %2208 = vmatprep.subr.mxu0 0.0
  %2209 = vmatpush1.msra.mxu0 %v2204
  %2210 = vmatprep.subr.mxu0 0.0
  %2211 = vmatpush1.msra.mxu0 %v2203
  %2212 = vmatprep.subr.mxu0 0.0
  %2213 = vmatpush1.msra.mxu0 %v2202
  %2214 = vmatprep.subr.mxu0 0.0
  %2215 = vmatpush1.msra.mxu0 %v2201
  %2216 = vmatprep.subr.mxu0 0.0
  %2217 = vmatpush1.msra.mxu0 %v2200
  %2218 = vmatprep.subr.mxu0 0.0
  %2219 = vmatpush1.msra.mxu0 %v2199
  %2220 = vmatprep.subr.mxu0 0.0
  %2221 = vmatpush1.msra.mxu0 %v2198
  %2222 = vmatprep.subr.mxu0 0.0
  %2223 = vmatpush1.msra.mxu0 %v2197
  %2224 = vmatprep.subr.mxu0 0.0
  %2225 = vmatpush1.msra.mxu0 %v2196
  %2226 = vmatprep.subr.mxu0 0.0
  %2227 = vmatpush1.msra.mxu0 %v2195
  %2228 = vmatprep.subr.mxu0 0.0
  %2229 = vmatpush1.msra.mxu0 %v2194
  %2230 = vmatprep.subr.mxu0 0.0
  %2231 = vmatpush1.msra.mxu0 %v2193
  %2232 = vmatprep.subr.mxu0 0.0
  %2233 = vmatpush1.msra.mxu0 %v2192
  %2234 = vmatprep.subr.mxu0 0.0
  %2235 = vmatpush1.msra.mxu0 %v2191
  %2236 = vmatprep.subr.mxu0 0.0
  %2237 = vmatpush1.msra.mxu0 %v2190
  %2238 = vmatprep.subr.mxu0 0.0
  %2239 = vmatpush2.msra.mxu0 0.0
  %2240 = vmatprep.subr.mxu0 0.0
  %2241 = vmatpush2.msra.mxu0 0.0
  %2242 = vmatprep.subr.mxu0 0.0
  %2243 = vmatpush2.msra.mxu0 0.0
  %2244 = vmatprep.subr.mxu0 0.0
  %2245 = vmatpush2.msra.mxu0 0.0
  %2246 = vmatprep.subr.mxu0 0.0
  %2247 = vmatpush2.msra.mxu0 0.0
  %2248 = vmatprep.subr.mxu0 0.0
  %2249 = vmatpush2.msra.mxu0 0.0
  %2250 = vmatprep.subr.mxu0 0.0
  %2251 = vmatpush2.msra.mxu0 0.0
  %2252 = vmatprep.subr.mxu0 0.0
  %2253 = vmatpush2.msra.mxu0 0.0
  %2254 = vmatprep.subr.mxu0 0.0
  %2255 = vmatpush2.msra.mxu0 0.0
  %2256 = vmatprep.subr.mxu0 0.0
  %2257 = vmatpush2.msra.mxu0 0.0
  %2258 = vmatprep.subr.mxu0 0.0
  %2259 = vmatpush2.msra.mxu0 0.0
  %2260 = vmatprep.subr.mxu0 0.0
  %2261 = vmatpush2.msra.mxu0 0.0
  %2262 = vmatprep.subr.mxu0 0.0
  %2263 = vmatpush2.msra.mxu0 0.0
  %2264 = vmatprep.subr.mxu0 0.0
  %2265 = vmatpush2.msra.mxu0 0.0
  %2266 = vmatprep.subr.mxu0 0.0
  %2267 = vmatpush2.msra.mxu0 0.0
  %2268 = vmatprep.subr.mxu0 0.0
  %2269 = vmatpush2.msra.mxu0 0.0
  %2270 = vmatprep.mubr.f32.mxu0 0.0
  %2271 = vmatmul.mubr.f32.gmra.mxu0 %v2165
  %v2272 = vpop.f32.mrf.mxu0
  %v2273 = vadd.f32 0.0, %v2272
  %v2274 = vpop.f32.mrf.mxu0
  %2275 = vmatprep.mubr.f32.mxu0 0.0
  %2276 = vmatmul.mubr.f32.gmra.mxu0 %v2166
  %v2277 = vpop.f32.mrf.mxu0
  %v2278 = vadd.f32 0.0, %v2277
  %v2279 = vpop.f32.mrf.mxu0
  %2280 = vmatprep.mubr.f32.mxu0 0.0
  %2281 = vmatmul.mubr.f32.gmra.mxu0 %v2167
  %v2282 = vpop.f32.mrf.mxu0
  %v2283 = vadd.f32 0.0, %v2282
  %v2284 = vpop.f32.mrf.mxu0
  %2285 = vmatprep.mubr.f32.mxu0 0.0
  %2286 = vmatmul.mubr.f32.gmra.mxu0 %v2168
  %v2287 = vpop.f32.mrf.mxu0
  %v2288 = vadd.f32 0.0, %v2287
  %v2289 = vpop.f32.mrf.mxu0
  %2290 = vmatprep.mubr.f32.mxu0 0.0
  %2291 = vmatmul.mubr.f32.gmra.mxu0 %v2169
  %v2292 = vpop.f32.mrf.mxu0
  %v2293 = vadd.f32 0.0, %v2292
  %v2294 = vpop.f32.mrf.mxu0
  %2295 = vmatprep.mubr.f32.mxu0 0.0
  %2296 = vmatmul.mubr.f32.gmra.mxu0 %v2170
  %v2297 = vpop.f32.mrf.mxu0
  %v2298 = vadd.f32 0.0, %v2297
  %v2299 = vpop.f32.mrf.mxu0
  %2300 = vmatprep.mubr.f32.mxu0 0.0
  %2301 = vmatmul.mubr.f32.gmra.mxu0 %v2171
  %v2302 = vpop.f32.mrf.mxu0
  %v2303 = vadd.f32 0.0, %v2302
  %v2304 = vpop.f32.mrf.mxu0
  %2305 = vmatprep.mubr.f32.mxu0 0.0
  %2306 = vmatmul.mubr.f32.gmra.mxu0 %v2172
  %v2307 = vpop.f32.mrf.mxu0
  %v2308 = vadd.f32 0.0, %v2307
  %v2309 = vpop.f32.mrf.mxu0
  %2310 = vmatprep.mubr.f32.mxu0 0.0
  %2311 = vmatmul.mubr.f32.gmra.mxu0 %v2173
  %v2312 = vpop.f32.mrf.mxu0
  %v2313 = vadd.f32 0.0, %v2312
  %v2314 = vpop.f32.mrf.mxu0
  %2315 = vmatprep.mubr.f32.mxu0 0.0
  %2316 = vmatmul.mubr.f32.gmra.mxu0 %v2174
  %v2317 = vpop.f32.mrf.mxu0
  %v2318 = vadd.f32 0.0, %v2317
  %v2319 = vpop.f32.mrf.mxu0
  %2320 = vmatprep.mubr.f32.mxu0 0.0
  %2321 = vmatmul.mubr.f32.gmra.mxu0 %v2175
  %v2322 = vpop.f32.mrf.mxu0
  %v2323 = vadd.f32 0.0, %v2322
  %v2324 = vpop.f32.mrf.mxu0
  %2325 = vmatprep.mubr.f32.mxu0 0.0
  %2326 = vmatmul.mubr.f32.gmra.mxu0 %v2176
  %v2327 = vpop.f32.mrf.mxu0
  %v2328 = vadd.f32 0.0, %v2327
  %v2329 = vpop.f32.mrf.mxu0
  %2330 = vmatprep.mubr.f32.mxu0 0.0
  %2331 = vmatmul.mubr.f32.gmra.mxu0 %v2177
  %v2332 = vpop.f32.mrf.mxu0
  %v2333 = vadd.f32 0.0, %v2332
  %v2334 = vpop.f32.mrf.mxu0
  %2335 = vmatprep.mubr.f32.mxu0 0.0
  %2336 = vmatmul.mubr.f32.gmra.mxu0 %v2178
  %v2337 = vpop.f32.mrf.mxu0
  %v2338 = vadd.f32 0.0, %v2337
  %v2339 = vpop.f32.mrf.mxu0
  %2340 = vmatprep.mubr.f32.mxu0 0.0
  %2341 = vmatmul.mubr.f32.gmra.mxu0 %v2179
  %v2342 = vpop.f32.mrf.mxu0
  %v2343 = vadd.f32 0.0, %v2342
  %v2344 = vpop.f32.mrf.mxu0
  %2345 = vmatprep.mubr.f32.mxu0 0.0
  %2346 = vmatmul.mubr.f32.gmra.mxu0 %v2180
  %v2347 = vpop.f32.mrf.mxu0
  %v2348 = vadd.f32 0.0, %v2347
  %v2349 = vpop.f32.mrf.mxu0
  %2350 = vmatprep.mubr.f32.mxu0 0.0
  %2351 = vmatmul.mubr.f32.gmra.mxu0 %v2181
  %v2352 = vpop.f32.mrf.mxu0
  %v2353 = vadd.f32 0.0, %v2352
  %v2354 = vpop.f32.mrf.mxu0
  %2355 = vmatprep.mubr.f32.mxu0 0.0
  %2356 = vmatmul.mubr.f32.gmra.mxu0 %v2182
  %v2357 = vpop.f32.mrf.mxu0
  %v2358 = vadd.f32 0.0, %v2357
  %v2359 = vpop.f32.mrf.mxu0
  %2360 = vmatprep.mubr.f32.mxu0 0.0
  %2361 = vmatmul.mubr.f32.gmra.mxu0 %v2183
  %v2362 = vpop.f32.mrf.mxu0
  %v2363 = vadd.f32 0.0, %v2362
  %v2364 = vpop.f32.mrf.mxu0
  %2365 = vmatprep.mubr.f32.mxu0 0.0
  %2366 = vmatmul.mubr.f32.gmra.mxu0 %v2184
  %v2367 = vpop.f32.mrf.mxu0
  %v2368 = vadd.f32 0.0, %v2367
  %v2369 = vpop.f32.mrf.mxu0
  %2370 = vmatprep.mubr.f32.mxu0 0.0
  %2371 = vmatmul.mubr.f32.gmra.mxu0 %v2185
  %v2372 = vpop.f32.mrf.mxu0
  %v2373 = vadd.f32 0.0, %v2372
  %v2374 = vpop.f32.mrf.mxu0
  %2375 = vmatprep.mubr.f32.mxu0 0.0
  %2376 = vmatmul.mubr.f32.gmra.mxu0 %v2186
  %v2377 = vpop.f32.mrf.mxu0
  %v2378 = vadd.f32 0.0, %v2377
  %v2379 = vpop.f32.mrf.mxu0
  %2380 = vmatprep.mubr.f32.mxu0 0.0
  %2381 = vmatmul.mubr.f32.gmra.mxu0 %v2187
  %v2382 = vpop.f32.mrf.mxu0
  %v2383 = vadd.f32 0.0, %v2382
  %v2384 = vpop.f32.mrf.mxu0
  %2385 = vmatprep.mubr.f32.mxu0 0.0
  %2386 = vmatmul.mubr.f32.gmra.mxu0 %v2188
  %v2387 = vpop.f32.mrf.mxu0
  %v2388 = vadd.f32 0.0, %v2387
  %v2389 = vpop.f32.mrf.mxu0
  %2390 = vmatprep.mubr.f32.mxu0 0.0
  %2391 = vmatmul.mubr.f32.gmra.mxu0 %v2189
  %v2392 = vpop.f32.mrf.mxu0
  %v2393 = vadd.f32 0.0, %v2392
  %v2394 = vpop.f32.mrf.mxu0
  %2395 = vdwg.mxu0
  %v2396 = vld [vmem:[%s9] sm:$0x1]
  %v2398 = vlaneseq
  %v2399 = vshrl.u32 %v2398, 7
  %v2400 = vsub.s32 0, %v2399
  %v2401 = vrot.slane %v2396, %v2400
  %2403 = vmatprep.subr.mxu0 0.0
  %2404 = vmatpush1.msra.mxu0 %v2348
  %2405 = vmatprep.subr.mxu0 0.0
  %2406 = vmatpush1.msra.mxu0 %v2343
  %2407 = vmatprep.subr.mxu0 0.0
  %2408 = vmatpush1.msra.mxu0 %v2338
  %2409 = vmatprep.subr.mxu0 0.0
  %2410 = vmatpush1.msra.mxu0 %v2333
  %2411 = vmatprep.subr.mxu0 0.0
  %2412 = vmatpush1.msra.mxu0 %v2328
  %2413 = vmatprep.subr.mxu0 0.0
  %2414 = vmatpush1.msra.mxu0 %v2323
  %2415 = vmatprep.subr.mxu0 0.0
  %2416 = vmatpush1.msra.mxu0 %v2318
  %2417 = vmatprep.subr.mxu0 0.0
  %2418 = vmatpush1.msra.mxu0 %v2313
  %2419 = vmatprep.subr.mxu0 0.0
  %2420 = vmatpush1.msra.mxu0 %v2308
  %2421 = vmatprep.subr.mxu0 0.0
  %2422 = vmatpush1.msra.mxu0 %v2303
  %2423 = vmatprep.subr.mxu0 0.0
  %2424 = vmatpush1.msra.mxu0 %v2298
  %2425 = vmatprep.subr.mxu0 0.0
  %2426 = vmatpush1.msra.mxu0 %v2293
  %2427 = vmatprep.subr.mxu0 0.0
  %2428 = vmatpush1.msra.mxu0 %v2288
  %2429 = vmatprep.subr.mxu0 0.0
  %2430 = vmatpush1.msra.mxu0 %v2283
  %2431 = vmatprep.subr.mxu0 0.0
  %2432 = vmatpush1.msra.mxu0 %v2278
  %2433 = vmatprep.subr.mxu0 0.0
  %2434 = vmatpush1.msra.mxu0 %v2273
  %2435 = vmatprep.subr.mxu0 0.0
  %2436 = vmatpush2.msra.mxu0 0.0
  %2437 = vmatprep.subr.mxu0 0.0
  %2438 = vmatpush2.msra.mxu0 0.0
  %2439 = vmatprep.subr.mxu0 0.0
  %2440 = vmatpush2.msra.mxu0 0.0
  %2441 = vmatprep.subr.mxu0 0.0
  %2442 = vmatpush2.msra.mxu0 0.0
  %2443 = vmatprep.subr.mxu0 0.0
  %2444 = vmatpush2.msra.mxu0 0.0
  %2445 = vmatprep.subr.mxu0 0.0
  %2446 = vmatpush2.msra.mxu0 0.0
  %2447 = vmatprep.subr.mxu0 0.0
  %2448 = vmatpush2.msra.mxu0 0.0
  %2449 = vmatprep.subr.mxu0 0.0
  %2450 = vmatpush2.msra.mxu0 %v2393
  %2451 = vmatprep.subr.mxu0 0.0
  %2452 = vmatpush2.msra.mxu0 %v2388
  %2453 = vmatprep.subr.mxu0 0.0
  %2454 = vmatpush2.msra.mxu0 %v2383
  %2455 = vmatprep.subr.mxu0 0.0
  %2456 = vmatpush2.msra.mxu0 %v2378
  %2457 = vmatprep.subr.mxu0 0.0
  %2458 = vmatpush2.msra.mxu0 %v2373
  %2459 = vmatprep.subr.mxu0 0.0
  %2460 = vmatpush2.msra.mxu0 %v2368
  %2461 = vmatprep.subr.mxu0 0.0
  %2462 = vmatpush2.msra.mxu0 %v2363
  %2463 = vmatprep.subr.mxu0 0.0
  %2464 = vmatpush2.msra.mxu0 %v2358
  %2465 = vmatprep.subr.mxu0 0.0
  %2466 = vmatpush2.msra.mxu0 %v2353
  %2467 = vmatprep.mubr.f32.mxu0 %v1045
  %2468 = vmatmul.mubr.f32.gmra.mxu0 %v647
  %v2469 = vpop.f32.mrf.mxu0
  %v2470 = vadd.f32 %v2401, %v2469
  %v2471 = vpop.f32.mrf.mxu0
  %2472 = vmatprep.mubr.f32.mxu0 %v1048
  %2473 = vmatmul.mubr.f32.gmra.mxu0 %v649
  %v2474 = vpop.f32.mrf.mxu0
  %v2475 = vadd.f32 %v2401, %v2474
  %v2476 = vpop.f32.mrf.mxu0
  %2477 = vmatprep.mubr.f32.mxu0 %v1051
  %2478 = vmatmul.mubr.f32.gmra.mxu0 %v651
  %v2479 = vpop.f32.mrf.mxu0
  %v2480 = vadd.f32 %v2401, %v2479
  %v2481 = vpop.f32.mrf.mxu0
  %2482 = vmatprep.mubr.f32.mxu0 %v1054
  %2483 = vmatmul.mubr.f32.gmra.mxu0 %v653
  %v2484 = vpop.f32.mrf.mxu0
  %v2485 = vadd.f32 %v2401, %v2484
  %v2486 = vpop.f32.mrf.mxu0
  %2487 = vmatprep.mubr.f32.mxu0 %v1057
  %2488 = vmatmul.mubr.f32.gmra.mxu0 %v655
  %v2489 = vpop.f32.mrf.mxu0
  %v2490 = vadd.f32 %v2401, %v2489
  %v2491 = vpop.f32.mrf.mxu0
  %2492 = vmatprep.mubr.f32.mxu0 %v1060
  %2493 = vmatmul.mubr.f32.gmra.mxu0 %v657
  %v2494 = vpop.f32.mrf.mxu0
  %v2495 = vadd.f32 %v2401, %v2494
  %v2496 = vpop.f32.mrf.mxu0
  %2497 = vmatprep.mubr.f32.mxu0 %v1063
  %2498 = vmatmul.mubr.f32.gmra.mxu0 %v659
  %v2499 = vpop.f32.mrf.mxu0
  %v2500 = vadd.f32 %v2401, %v2499
  %v2501 = vpop.f32.mrf.mxu0
  %2502 = vmatprep.mubr.f32.mxu0 %v1066
  %2503 = vmatmul.mubr.f32.gmra.mxu0 %v661
  %v2504 = vpop.f32.mrf.mxu0
  %v2505 = vadd.f32 %v2401, %v2504
  %v2506 = vpop.f32.mrf.mxu0
  %2507 = vmatprep.mubr.f32.mxu0 %v1069
  %2508 = vmatmul.mubr.f32.gmra.mxu0 %v663
  %v2509 = vpop.f32.mrf.mxu0
  %v2510 = vadd.f32 %v2401, %v2509
  %v2511 = vpop.f32.mrf.mxu0
  %2512 = vmatprep.mubr.f32.mxu0 %v1072
  %2513 = vmatmul.mubr.f32.gmra.mxu0 %v665
  %v2514 = vpop.f32.mrf.mxu0
  %v2515 = vadd.f32 %v2401, %v2514
  %v2516 = vpop.f32.mrf.mxu0
  %2517 = vmatprep.mubr.f32.mxu0 %v1075
  %2518 = vmatmul.mubr.f32.gmra.mxu0 %v667
  %v2519 = vpop.f32.mrf.mxu0
  %v2520 = vadd.f32 %v2401, %v2519
  %v2521 = vpop.f32.mrf.mxu0
  %2522 = vmatprep.mubr.f32.mxu0 %v1078
  %2523 = vmatmul.mubr.f32.gmra.mxu0 %v669
  %v2524 = vpop.f32.mrf.mxu0
  %v2525 = vadd.f32 %v2401, %v2524
  %v2526 = vpop.f32.mrf.mxu0
  %2527 = vmatprep.mubr.f32.mxu0 %v1081
  %2528 = vmatmul.mubr.f32.gmra.mxu0 %v671
  %v2529 = vpop.f32.mrf.mxu0
  %v2530 = vadd.f32 %v2401, %v2529
  %v2531 = vpop.f32.mrf.mxu0
  %2532 = vmatprep.mubr.f32.mxu0 %v1084
  %2533 = vmatmul.mubr.f32.gmra.mxu0 %v673
  %v2534 = vpop.f32.mrf.mxu0
  %v2535 = vadd.f32 %v2401, %v2534
  %v2536 = vpop.f32.mrf.mxu0
  %2537 = vmatprep.mubr.f32.mxu0 %v1087
  %2538 = vmatmul.mubr.f32.gmra.mxu0 %v675
  %v2539 = vpop.f32.mrf.mxu0
  %v2540 = vadd.f32 %v2401, %v2539
  %v2541 = vpop.f32.mrf.mxu0
  %2542 = vmatprep.mubr.f32.mxu0 %v1090
  %2543 = vmatmul.mubr.f32.gmra.mxu0 %v677
  %v2544 = vpop.f32.mrf.mxu0
  %v2545 = vadd.f32 %v2401, %v2544
  %v2546 = vpop.f32.mrf.mxu0
  %2547 = vmatprep.mubr.f32.mxu0 %v1093
  %2548 = vmatmul.mubr.f32.gmra.mxu0 %v679
  %v2549 = vpop.f32.mrf.mxu0
  %v2550 = vadd.f32 %v2401, %v2549
  %v2551 = vpop.f32.mrf.mxu0
  %2552 = vmatprep.mubr.f32.mxu0 %v1096
  %2553 = vmatmul.mubr.f32.gmra.mxu0 %v681
  %v2554 = vpop.f32.mrf.mxu0
  %v2555 = vadd.f32 %v2401, %v2554
  %v2556 = vpop.f32.mrf.mxu0
  %2557 = vmatprep.mubr.f32.mxu0 %v1099
  %2558 = vmatmul.mubr.f32.gmra.mxu0 %v683
  %v2559 = vpop.f32.mrf.mxu0
  %v2560 = vadd.f32 %v2401, %v2559
  %v2561 = vpop.f32.mrf.mxu0
  %2562 = vmatprep.mubr.f32.mxu0 %v1102
  %2563 = vmatmul.mubr.f32.gmra.mxu0 %v685
  %v2564 = vpop.f32.mrf.mxu0
  %v2565 = vadd.f32 %v2401, %v2564
  %v2566 = vpop.f32.mrf.mxu0
  %2567 = vmatprep.mubr.f32.mxu0 %v1105
  %2568 = vmatmul.mubr.f32.gmra.mxu0 %v687
  %v2569 = vpop.f32.mrf.mxu0
  %v2570 = vadd.f32 %v2401, %v2569
  %v2571 = vpop.f32.mrf.mxu0
  %2572 = vmatprep.mubr.f32.mxu0 %v1108
  %2573 = vmatmul.mubr.f32.gmra.mxu0 %v689
  %v2574 = vpop.f32.mrf.mxu0
  %v2575 = vadd.f32 %v2401, %v2574
  %v2576 = vpop.f32.mrf.mxu0
  %2577 = vmatprep.mubr.f32.mxu0 %v1111
  %2578 = vmatmul.mubr.f32.gmra.mxu0 %v691
  %v2579 = vpop.f32.mrf.mxu0
  %v2580 = vadd.f32 %v2401, %v2579
  %v2581 = vpop.f32.mrf.mxu0
  %2582 = vmatprep.mubr.f32.mxu0 %v1114
  %2583 = vmatmul.mubr.f32.gmra.mxu0 %v693
  %v2584 = vpop.f32.mrf.mxu0
  %v2585 = vadd.f32 %v2401, %v2584
  %v2586 = vpop.f32.mrf.mxu0
  %2587 = vmatprep.mubr.f32.mxu0 %v1117
  %2588 = vmatmul.mubr.f32.gmra.mxu0 %v695
  %v2589 = vpop.f32.mrf.mxu0
  %v2590 = vadd.f32 %v2401, %v2589
  %v2591 = vpop.f32.mrf.mxu0
  %2592 = vdwg.mxu0
  %v2593 = vmax.f32 %v2470, 0.0
  %v2594 = vmax.f32 %v2475, 0.0
  %v2595 = vmax.f32 %v2480, 0.0
  %v2596 = vmax.f32 %v2485, 0.0
  %v2597 = vmax.f32 %v2490, 0.0
  %v2598 = vmax.f32 %v2495, 0.0
  %v2599 = vmax.f32 %v2500, 0.0
  %v2600 = vmax.f32 %v2505, 0.0
  %v2601 = vmax.f32 %v2510, 0.0
  %v2602 = vmax.f32 %v2515, 0.0
  %v2603 = vmax.f32 %v2520, 0.0
  %v2604 = vmax.f32 %v2525, 0.0
  %v2605 = vmax.f32 %v2530, 0.0
  %v2606 = vmax.f32 %v2535, 0.0
  %v2607 = vmax.f32 %v2540, 0.0
  %v2608 = vmax.f32 %v2545, 0.0
  %v2609 = vmax.f32 %v2550, 0.0
  %v2610 = vmax.f32 %v2555, 0.0
  %v2611 = vmax.f32 %v2560, 0.0
  %v2612 = vmax.f32 %v2565, 0.0
  %v2613 = vmax.f32 %v2570, 0.0
  %v2614 = vmax.f32 %v2575, 0.0
  %v2615 = vmax.f32 %v2580, 0.0
  %v2616 = vmax.f32 %v2585, 0.0
  %v2617 = vmax.f32 %v2590, 0.0
  %v2618 = vld [vmem:[%s10] sm:$0xff]
  %v2619 = vld [vmem:[%s10 + $0x8] sm:$0xff]
  %v2620 = vld [vmem:[%s10 + $0x10] sm:$0xff]
  %v2621 = vld [vmem:[%s10 + $0x18] sm:$0xff]
  %v2622 = vld [vmem:[%s10 + $0x20] sm:$0xff]
  %v2623 = vld [vmem:[%s10 + $0x28] sm:$0xff]
  %v2624 = vld [vmem:[%s10 + $0x30] sm:$0xff]
  %v2625 = vld [vmem:[%s10 + $0x38] sm:$0xff]
  %v2626 = vld [vmem:[%s10 + $0x40] sm:$0xff]
  %v2627 = vld [vmem:[%s10 + $0x48] sm:$0xff]
  %v2628 = vld [vmem:[%s10 + $0x50] sm:$0xff]
  %v2629 = vld [vmem:[%s10 + $0x58] sm:$0xff]
  %v2630 = vld [vmem:[%s10 + $0x60] sm:$0xff]
  %v2631 = vld [vmem:[%s10 + $0x68] sm:$0xff]
  %v2632 = vld [vmem:[%s10 + $0x70] sm:$0xff]
  %v2633 = vld [vmem:[%s10 + $0x78] sm:$0xff]
  %2634 = vmatprep.subr.mxu0 0.0
  %2635 = vmatpush1.msra.mxu0 %v2633
  %2636 = vmatprep.subr.mxu0 0.0
  %2637 = vmatpush1.msra.mxu0 %v2632
  %2638 = vmatprep.subr.mxu0 0.0
  %2639 = vmatpush1.msra.mxu0 %v2631
  %2640 = vmatprep.subr.mxu0 0.0
  %2641 = vmatpush1.msra.mxu0 %v2630
  %2642 = vmatprep.subr.mxu0 0.0
  %2643 = vmatpush1.msra.mxu0 %v2629
  %2644 = vmatprep.subr.mxu0 0.0
  %2645 = vmatpush1.msra.mxu0 %v2628
  %2646 = vmatprep.subr.mxu0 0.0
  %2647 = vmatpush1.msra.mxu0 %v2627
  %2648 = vmatprep.subr.mxu0 0.0
  %2649 = vmatpush1.msra.mxu0 %v2626
  %2650 = vmatprep.subr.mxu0 0.0
  %2651 = vmatpush1.msra.mxu0 %v2625
  %2652 = vmatprep.subr.mxu0 0.0
  %2653 = vmatpush1.msra.mxu0 %v2624
  %2654 = vmatprep.subr.mxu0 0.0
  %2655 = vmatpush1.msra.mxu0 %v2623
  %2656 = vmatprep.subr.mxu0 0.0
  %2657 = vmatpush1.msra.mxu0 %v2622
  %2658 = vmatprep.subr.mxu0 0.0
  %2659 = vmatpush1.msra.mxu0 %v2621
  %2660 = vmatprep.subr.mxu0 0.0
  %2661 = vmatpush1.msra.mxu0 %v2620
  %2662 = vmatprep.subr.mxu0 0.0
  %2663 = vmatpush1.msra.mxu0 %v2619
  %2664 = vmatprep.subr.mxu0 0.0
  %2665 = vmatpush1.msra.mxu0 %v2618
  %2666 = vmatprep.subr.mxu0 0.0
  %2667 = vmatpush2.msra.mxu0 0.0
  %2668 = vmatprep.subr.mxu0 0.0
  %2669 = vmatpush2.msra.mxu0 0.0
  %2670 = vmatprep.subr.mxu0 0.0
  %2671 = vmatpush2.msra.mxu0 0.0
  %2672 = vmatprep.subr.mxu0 0.0
  %2673 = vmatpush2.msra.mxu0 0.0
  %2674 = vmatprep.subr.mxu0 0.0
  %2675 = vmatpush2.msra.mxu0 0.0
  %2676 = vmatprep.subr.mxu0 0.0
  %2677 = vmatpush2.msra.mxu0 0.0
  %2678 = vmatprep.subr.mxu0 0.0
  %2679 = vmatpush2.msra.mxu0 0.0
  %2680 = vmatprep.subr.mxu0 0.0
  %2681 = vmatpush2.msra.mxu0 0.0
  %2682 = vmatprep.subr.mxu0 0.0
  %2683 = vmatpush2.msra.mxu0 0.0
  %2684 = vmatprep.subr.mxu0 0.0
  %2685 = vmatpush2.msra.mxu0 0.0
  %2686 = vmatprep.subr.mxu0 0.0
  %2687 = vmatpush2.msra.mxu0 0.0
  %2688 = vmatprep.subr.mxu0 0.0
  %2689 = vmatpush2.msra.mxu0 0.0
  %2690 = vmatprep.subr.mxu0 0.0
  %2691 = vmatpush2.msra.mxu0 0.0
  %2692 = vmatprep.subr.mxu0 0.0
  %2693 = vmatpush2.msra.mxu0 0.0
  %2694 = vmatprep.subr.mxu0 0.0
  %2695 = vmatpush2.msra.mxu0 0.0
  %2696 = vmatprep.subr.mxu0 0.0
  %2697 = vmatpush2.msra.mxu0 0.0
  %2698 = vmatprep.mubr.f32.mxu0 0.0
  %2699 = vmatmul.mubr.f32.gmra.mxu0 %v2593
  %v2700 = vpop.f32.mrf.mxu0
  %v2701 = vadd.f32 0.0, %v2700
  %v2702 = vpop.f32.mrf.mxu0
  %2703 = vmatprep.mubr.f32.mxu0 0.0
  %2704 = vmatmul.mubr.f32.gmra.mxu0 %v2594
  %v2705 = vpop.f32.mrf.mxu0
  %v2706 = vadd.f32 0.0, %v2705
  %v2707 = vpop.f32.mrf.mxu0
  %2708 = vmatprep.mubr.f32.mxu0 0.0
  %2709 = vmatmul.mubr.f32.gmra.mxu0 %v2595
  %v2710 = vpop.f32.mrf.mxu0
  %v2711 = vadd.f32 0.0, %v2710
  %v2712 = vpop.f32.mrf.mxu0
  %2713 = vmatprep.mubr.f32.mxu0 0.0
  %2714 = vmatmul.mubr.f32.gmra.mxu0 %v2596
  %v2715 = vpop.f32.mrf.mxu0
  %v2716 = vadd.f32 0.0, %v2715
  %v2717 = vpop.f32.mrf.mxu0
  %2718 = vmatprep.mubr.f32.mxu0 0.0
  %2719 = vmatmul.mubr.f32.gmra.mxu0 %v2597
  %v2720 = vpop.f32.mrf.mxu0
  %v2721 = vadd.f32 0.0, %v2720
  %v2722 = vpop.f32.mrf.mxu0
  %2723 = vmatprep.mubr.f32.mxu0 0.0
  %2724 = vmatmul.mubr.f32.gmra.mxu0 %v2598
  %v2725 = vpop.f32.mrf.mxu0
  %v2726 = vadd.f32 0.0, %v2725
  %v2727 = vpop.f32.mrf.mxu0
  %2728 = vmatprep.mubr.f32.mxu0 0.0
  %2729 = vmatmul.mubr.f32.gmra.mxu0 %v2599
  %v2730 = vpop.f32.mrf.mxu0
  %v2731 = vadd.f32 0.0, %v2730
  %v2732 = vpop.f32.mrf.mxu0
  %2733 = vmatprep.mubr.f32.mxu0 0.0
  %2734 = vmatmul.mubr.f32.gmra.mxu0 %v2600
  %v2735 = vpop.f32.mrf.mxu0
  %v2736 = vadd.f32 0.0, %v2735
  %v2737 = vpop.f32.mrf.mxu0
  %2738 = vmatprep.mubr.f32.mxu0 0.0
  %2739 = vmatmul.mubr.f32.gmra.mxu0 %v2601
  %v2740 = vpop.f32.mrf.mxu0
  %v2741 = vadd.f32 0.0, %v2740
  %v2742 = vpop.f32.mrf.mxu0
  %2743 = vmatprep.mubr.f32.mxu0 0.0
  %2744 = vmatmul.mubr.f32.gmra.mxu0 %v2602
  %v2745 = vpop.f32.mrf.mxu0
  %v2746 = vadd.f32 0.0, %v2745
  %v2747 = vpop.f32.mrf.mxu0
  %2748 = vmatprep.mubr.f32.mxu0 0.0
  %2749 = vmatmul.mubr.f32.gmra.mxu0 %v2603
  %v2750 = vpop.f32.mrf.mxu0
  %v2751 = vadd.f32 0.0, %v2750
  %v2752 = vpop.f32.mrf.mxu0
  %2753 = vmatprep.mubr.f32.mxu0 0.0
  %2754 = vmatmul.mubr.f32.gmra.mxu0 %v2604
  %v2755 = vpop.f32.mrf.mxu0
  %v2756 = vadd.f32 0.0, %v2755
  %v2757 = vpop.f32.mrf.mxu0
  %2758 = vmatprep.mubr.f32.mxu0 0.0
  %2759 = vmatmul.mubr.f32.gmra.mxu0 %v2605
  %v2760 = vpop.f32.mrf.mxu0
  %v2761 = vadd.f32 0.0, %v2760
  %v2762 = vpop.f32.mrf.mxu0
  %2763 = vmatprep.mubr.f32.mxu0 0.0
  %2764 = vmatmul.mubr.f32.gmra.mxu0 %v2606
  %v2765 = vpop.f32.mrf.mxu0
  %v2766 = vadd.f32 0.0, %v2765
  %v2767 = vpop.f32.mrf.mxu0
  %2768 = vmatprep.mubr.f32.mxu0 0.0
  %2769 = vmatmul.mubr.f32.gmra.mxu0 %v2607
  %v2770 = vpop.f32.mrf.mxu0
  %v2771 = vadd.f32 0.0, %v2770
  %v2772 = vpop.f32.mrf.mxu0
  %2773 = vmatprep.mubr.f32.mxu0 0.0
  %2774 = vmatmul.mubr.f32.gmra.mxu0 %v2608
  %v2775 = vpop.f32.mrf.mxu0
  %v2776 = vadd.f32 0.0, %v2775
  %v2777 = vpop.f32.mrf.mxu0
  %2778 = vmatprep.mubr.f32.mxu0 0.0
  %2779 = vmatmul.mubr.f32.gmra.mxu0 %v2609
  %v2780 = vpop.f32.mrf.mxu0
  %v2781 = vadd.f32 0.0, %v2780
  %v2782 = vpop.f32.mrf.mxu0
  %2783 = vmatprep.mubr.f32.mxu0 0.0
  %2784 = vmatmul.mubr.f32.gmra.mxu0 %v2610
  %v2785 = vpop.f32.mrf.mxu0
  %v2786 = vadd.f32 0.0, %v2785
  %v2787 = vpop.f32.mrf.mxu0
  %2788 = vmatprep.mubr.f32.mxu0 0.0
  %2789 = vmatmul.mubr.f32.gmra.mxu0 %v2611
  %v2790 = vpop.f32.mrf.mxu0
  %v2791 = vadd.f32 0.0, %v2790
  %v2792 = vpop.f32.mrf.mxu0
  %2793 = vmatprep.mubr.f32.mxu0 0.0
  %2794 = vmatmul.mubr.f32.gmra.mxu0 %v2612
  %v2795 = vpop.f32.mrf.mxu0
  %v2796 = vadd.f32 0.0, %v2795
  %v2797 = vpop.f32.mrf.mxu0
  %2798 = vmatprep.mubr.f32.mxu0 0.0
  %2799 = vmatmul.mubr.f32.gmra.mxu0 %v2613
  %v2800 = vpop.f32.mrf.mxu0
  %v2801 = vadd.f32 0.0, %v2800
  %v2802 = vpop.f32.mrf.mxu0
  %2803 = vmatprep.mubr.f32.mxu0 0.0
  %2804 = vmatmul.mubr.f32.gmra.mxu0 %v2614
  %v2805 = vpop.f32.mrf.mxu0
  %v2806 = vadd.f32 0.0, %v2805
  %v2807 = vpop.f32.mrf.mxu0
  %2808 = vmatprep.mubr.f32.mxu0 0.0
  %2809 = vmatmul.mubr.f32.gmra.mxu0 %v2615
  %v2810 = vpop.f32.mrf.mxu0
  %v2811 = vadd.f32 0.0, %v2810
  %v2812 = vpop.f32.mrf.mxu0
  %2813 = vmatprep.mubr.f32.mxu0 0.0
  %2814 = vmatmul.mubr.f32.gmra.mxu0 %v2616
  %v2815 = vpop.f32.mrf.mxu0
  %v2816 = vadd.f32 0.0, %v2815
  %v2817 = vpop.f32.mrf.mxu0
  %2818 = vmatprep.mubr.f32.mxu0 0.0
  %2819 = vmatmul.mubr.f32.gmra.mxu0 %v2617
  %v2820 = vpop.f32.mrf.mxu0
  %v2821 = vadd.f32 0.0, %v2820
  %v2822 = vpop.f32.mrf.mxu0
  %2823 = vdwg.mxu0
  %v2824 = vld [vmem:[%s11] sm:$0x1]
  %v2826 = vlaneseq
  %v2827 = vshrl.u32 %v2826, 7
  %v2828 = vsub.s32 0, %v2827
  %v2829 = vrot.slane %v2824, %v2828
  %2831 = vmatprep.subr.mxu0 0.0
  %2832 = vmatpush1.msra.mxu0 %v2776
  %2833 = vmatprep.subr.mxu0 0.0
  %2834 = vmatpush1.msra.mxu0 %v2771
  %2835 = vmatprep.subr.mxu0 0.0
  %2836 = vmatpush1.msra.mxu0 %v2766
  %2837 = vmatprep.subr.mxu0 0.0
  %2838 = vmatpush1.msra.mxu0 %v2761
  %2839 = vmatprep.subr.mxu0 0.0
  %2840 = vmatpush1.msra.mxu0 %v2756
  %2841 = vmatprep.subr.mxu0 0.0
  %2842 = vmatpush1.msra.mxu0 %v2751
  %2843 = vmatprep.subr.mxu0 0.0
  %2844 = vmatpush1.msra.mxu0 %v2746
  %2845 = vmatprep.subr.mxu0 0.0
  %2846 = vmatpush1.msra.mxu0 %v2741
  %2847 = vmatprep.subr.mxu0 0.0
  %2848 = vmatpush1.msra.mxu0 %v2736
  %2849 = vmatprep.subr.mxu0 0.0
  %2850 = vmatpush1.msra.mxu0 %v2731
  %2851 = vmatprep.subr.mxu0 0.0
  %2852 = vmatpush1.msra.mxu0 %v2726
  %2853 = vmatprep.subr.mxu0 0.0
  %2854 = vmatpush1.msra.mxu0 %v2721
  %2855 = vmatprep.subr.mxu0 0.0
  %2856 = vmatpush1.msra.mxu0 %v2716
  %2857 = vmatprep.subr.mxu0 0.0
  %2858 = vmatpush1.msra.mxu0 %v2711
  %2859 = vmatprep.subr.mxu0 0.0
  %2860 = vmatpush1.msra.mxu0 %v2706
  %2861 = vmatprep.subr.mxu0 0.0
  %2862 = vmatpush1.msra.mxu0 %v2701
  %2863 = vmatprep.subr.mxu0 0.0
  %2864 = vmatpush2.msra.mxu0 0.0
  %2865 = vmatprep.subr.mxu0 0.0
  %2866 = vmatpush2.msra.mxu0 0.0
  %2867 = vmatprep.subr.mxu0 0.0
  %2868 = vmatpush2.msra.mxu0 0.0
  %2869 = vmatprep.subr.mxu0 0.0
  %2870 = vmatpush2.msra.mxu0 0.0
  %2871 = vmatprep.subr.mxu0 0.0
  %2872 = vmatpush2.msra.mxu0 0.0
  %2873 = vmatprep.subr.mxu0 0.0
  %2874 = vmatpush2.msra.mxu0 0.0
  %2875 = vmatprep.subr.mxu0 0.0
  %2876 = vmatpush2.msra.mxu0 0.0
  %2877 = vmatprep.subr.mxu0 0.0
  %2878 = vmatpush2.msra.mxu0 %v2821
  %2879 = vmatprep.subr.mxu0 0.0
  %2880 = vmatpush2.msra.mxu0 %v2816
  %2881 = vmatprep.subr.mxu0 0.0
  %2882 = vmatpush2.msra.mxu0 %v2811
  %2883 = vmatprep.subr.mxu0 0.0
  %2884 = vmatpush2.msra.mxu0 %v2806
  %2885 = vmatprep.subr.mxu0 0.0
  %2886 = vmatpush2.msra.mxu0 %v2801
  %2887 = vmatprep.subr.mxu0 0.0
  %2888 = vmatpush2.msra.mxu0 %v2796
  %2889 = vmatprep.subr.mxu0 0.0
  %2890 = vmatpush2.msra.mxu0 %v2791
  %2891 = vmatprep.subr.mxu0 0.0
  %2892 = vmatpush2.msra.mxu0 %v2786
  %2893 = vmatprep.subr.mxu0 0.0
  %2894 = vmatpush2.msra.mxu0 %v2781
  %2895 = vmatprep.mubr.f32.mxu0 %v1045
  %2896 = vmatmul.mubr.f32.gmra.mxu0 %v647
  %v2897 = vpop.f32.mrf.mxu0
  %v2898 = vadd.f32 %v2829, %v2897
  %v2899 = vpop.f32.mrf.mxu0
  %2900 = vmatprep.mubr.f32.mxu0 %v1048
  %2901 = vmatmul.mubr.f32.gmra.mxu0 %v649
  %v2902 = vpop.f32.mrf.mxu0
  %v2903 = vadd.f32 %v2829, %v2902
  %v2904 = vpop.f32.mrf.mxu0
  %2905 = vmatprep.mubr.f32.mxu0 %v1051
  %2906 = vmatmul.mubr.f32.gmra.mxu0 %v651
  %v2907 = vpop.f32.mrf.mxu0
  %v2908 = vadd.f32 %v2829, %v2907
  %v2909 = vpop.f32.mrf.mxu0
  %2910 = vmatprep.mubr.f32.mxu0 %v1054
  %2911 = vmatmul.mubr.f32.gmra.mxu0 %v653
  %v2912 = vpop.f32.mrf.mxu0
  %v2913 = vadd.f32 %v2829, %v2912
  %v2914 = vpop.f32.mrf.mxu0
  %2915 = vmatprep.mubr.f32.mxu0 %v1057
  %2916 = vmatmul.mubr.f32.gmra.mxu0 %v655
  %v2917 = vpop.f32.mrf.mxu0
  %v2918 = vadd.f32 %v2829, %v2917
  %v2919 = vpop.f32.mrf.mxu0
  %2920 = vmatprep.mubr.f32.mxu0 %v1060
  %2921 = vmatmul.mubr.f32.gmra.mxu0 %v657
  %v2922 = vpop.f32.mrf.mxu0
  %v2923 = vadd.f32 %v2829, %v2922
  %v2924 = vpop.f32.mrf.mxu0
  %2925 = vmatprep.mubr.f32.mxu0 %v1063
  %2926 = vmatmul.mubr.f32.gmra.mxu0 %v659
  %v2927 = vpop.f32.mrf.mxu0
  %v2928 = vadd.f32 %v2829, %v2927
  %v2929 = vpop.f32.mrf.mxu0
  %2930 = vmatprep.mubr.f32.mxu0 %v1066
  %2931 = vmatmul.mubr.f32.gmra.mxu0 %v661
  %v2932 = vpop.f32.mrf.mxu0
  %v2933 = vadd.f32 %v2829, %v2932
  %v2934 = vpop.f32.mrf.mxu0
  %2935 = vmatprep.mubr.f32.mxu0 %v1069
  %2936 = vmatmul.mubr.f32.gmra.mxu0 %v663
  %v2937 = vpop.f32.mrf.mxu0
  %v2938 = vadd.f32 %v2829, %v2937
  %v2939 = vpop.f32.mrf.mxu0
  %2940 = vmatprep.mubr.f32.mxu0 %v1072
  %2941 = vmatmul.mubr.f32.gmra.mxu0 %v665
  %v2942 = vpop.f32.mrf.mxu0
  %v2943 = vadd.f32 %v2829, %v2942
  %v2944 = vpop.f32.mrf.mxu0
  %2945 = vmatprep.mubr.f32.mxu0 %v1075
  %2946 = vmatmul.mubr.f32.gmra.mxu0 %v667
  %v2947 = vpop.f32.mrf.mxu0
  %v2948 = vadd.f32 %v2829, %v2947
  %v2949 = vpop.f32.mrf.mxu0
  %2950 = vmatprep.mubr.f32.mxu0 %v1078
  %2951 = vmatmul.mubr.f32.gmra.mxu0 %v669
  %v2952 = vpop.f32.mrf.mxu0
  %v2953 = vadd.f32 %v2829, %v2952
  %v2954 = vpop.f32.mrf.mxu0
  %2955 = vmatprep.mubr.f32.mxu0 %v1081
  %2956 = vmatmul.mubr.f32.gmra.mxu0 %v671
  %v2957 = vpop.f32.mrf.mxu0
  %v2958 = vadd.f32 %v2829, %v2957
  %v2959 = vpop.f32.mrf.mxu0
  %2960 = vmatprep.mubr.f32.mxu0 %v1084
  %2961 = vmatmul.mubr.f32.gmra.mxu0 %v673
  %v2962 = vpop.f32.mrf.mxu0
  %v2963 = vadd.f32 %v2829, %v2962
  %v2964 = vpop.f32.mrf.mxu0
  %2965 = vmatprep.mubr.f32.mxu0 %v1087
  %2966 = vmatmul.mubr.f32.gmra.mxu0 %v675
  %v2967 = vpop.f32.mrf.mxu0
  %v2968 = vadd.f32 %v2829, %v2967
  %v2969 = vpop.f32.mrf.mxu0
  %2970 = vmatprep.mubr.f32.mxu0 %v1090
  %2971 = vmatmul.mubr.f32.gmra.mxu0 %v677
  %v2972 = vpop.f32.mrf.mxu0
  %v2973 = vadd.f32 %v2829, %v2972
  %v2974 = vpop.f32.mrf.mxu0
  %2975 = vmatprep.mubr.f32.mxu0 %v1093
  %2976 = vmatmul.mubr.f32.gmra.mxu0 %v679
  %v2977 = vpop.f32.mrf.mxu0
  %v2978 = vadd.f32 %v2829, %v2977
  %v2979 = vpop.f32.mrf.mxu0
  %2980 = vmatprep.mubr.f32.mxu0 %v1096
  %2981 = vmatmul.mubr.f32.gmra.mxu0 %v681
  %v2982 = vpop.f32.mrf.mxu0
  %v2983 = vadd.f32 %v2829, %v2982
  %v2984 = vpop.f32.mrf.mxu0
  %2985 = vmatprep.mubr.f32.mxu0 %v1099
  %2986 = vmatmul.mubr.f32.gmra.mxu0 %v683
  %v2987 = vpop.f32.mrf.mxu0
  %v2988 = vadd.f32 %v2829, %v2987
  %v2989 = vpop.f32.mrf.mxu0
  %2990 = vmatprep.mubr.f32.mxu0 %v1102
  %2991 = vmatmul.mubr.f32.gmra.mxu0 %v685
  %v2992 = vpop.f32.mrf.mxu0
  %v2993 = vadd.f32 %v2829, %v2992
  %v2994 = vpop.f32.mrf.mxu0
  %2995 = vmatprep.mubr.f32.mxu0 %v1105
  %2996 = vmatmul.mubr.f32.gmra.mxu0 %v687
  %v2997 = vpop.f32.mrf.mxu0
  %v2998 = vadd.f32 %v2829, %v2997
  %v2999 = vpop.f32.mrf.mxu0
  %3000 = vmatprep.mubr.f32.mxu0 %v1108
  %3001 = vmatmul.mubr.f32.gmra.mxu0 %v689
  %v3002 = vpop.f32.mrf.mxu0
  %v3003 = vadd.f32 %v2829, %v3002
  %v3004 = vpop.f32.mrf.mxu0
  %3005 = vmatprep.mubr.f32.mxu0 %v1111
  %3006 = vmatmul.mubr.f32.gmra.mxu0 %v691
  %v3007 = vpop.f32.mrf.mxu0
  %v3008 = vadd.f32 %v2829, %v3007
  %v3009 = vpop.f32.mrf.mxu0
  %3010 = vmatprep.mubr.f32.mxu0 %v1114
  %3011 = vmatmul.mubr.f32.gmra.mxu0 %v693
  %v3012 = vpop.f32.mrf.mxu0
  %v3013 = vadd.f32 %v2829, %v3012
  %v3014 = vpop.f32.mrf.mxu0
  %3015 = vmatprep.mubr.f32.mxu0 %v1117
  %3016 = vmatmul.mubr.f32.gmra.mxu0 %v695
  %v3017 = vpop.f32.mrf.mxu0
  %v3018 = vadd.f32 %v2829, %v3017
  %v3019 = vpop.f32.mrf.mxu0
  %3020 = vdwg.mxu0
  %v3021 = vmax.f32 %v2898, 0.0
  %v3022 = vmax.f32 %v2903, 0.0
  %v3023 = vmax.f32 %v2908, 0.0
  %v3024 = vmax.f32 %v2913, 0.0
  %v3025 = vmax.f32 %v2918, 0.0
  %v3026 = vmax.f32 %v2923, 0.0
  %v3027 = vmax.f32 %v2928, 0.0
  %v3028 = vmax.f32 %v2933, 0.0
  %v3029 = vmax.f32 %v2938, 0.0
  %v3030 = vmax.f32 %v2943, 0.0
  %v3031 = vmax.f32 %v2948, 0.0
  %v3032 = vmax.f32 %v2953, 0.0
  %v3033 = vmax.f32 %v2958, 0.0
  %v3034 = vmax.f32 %v2963, 0.0
  %v3035 = vmax.f32 %v2968, 0.0
  %v3036 = vmax.f32 %v2973, 0.0
  %v3037 = vmax.f32 %v2978, 0.0
  %v3038 = vmax.f32 %v2983, 0.0
  %v3039 = vmax.f32 %v2988, 0.0
  %v3040 = vmax.f32 %v2993, 0.0
  %v3041 = vmax.f32 %v2998, 0.0
  %v3042 = vmax.f32 %v3003, 0.0
  %v3043 = vmax.f32 %v3008, 0.0
  %v3044 = vmax.f32 %v3013, 0.0
  %v3045 = vmax.f32 %v3018, 0.0
  %3046 = vst [vmem:[%s12] sm:$0xff] %v3021
  %3047 = vst [vmem:[%s12 + $0x8] sm:$0xff] %v3022
  %3048 = vst [vmem:[%s12 + $0x10] sm:$0xff] %v3023
  %3049 = vst [vmem:[%s12 + $0x18] sm:$0xff] %v3024
  %3050 = vst [vmem:[%s12 + $0x20] sm:$0xff] %v3025
  %3051 = vst [vmem:[%s12 + $0x28] sm:$0xff] %v3026
  %3052 = vst [vmem:[%s12 + $0x30] sm:$0xff] %v3027
  %3053 = vst [vmem:[%s12 + $0x38] sm:$0xff] %v3028
  %3054 = vst [vmem:[%s12 + $0x40] sm:$0xff] %v3029
  %3055 = vst [vmem:[%s12 + $0x48] sm:$0xff] %v3030
  %3056 = vst [vmem:[%s12 + $0x50] sm:$0xff] %v3031
  %3057 = vst [vmem:[%s12 + $0x58] sm:$0xff] %v3032
  %3058 = vst [vmem:[%s12 + $0x60] sm:$0xff] %v3033
  %3059 = vst [vmem:[%s12 + $0x68] sm:$0xff] %v3034
  %3060 = vst [vmem:[%s12 + $0x70] sm:$0xff] %v3035
  %3061 = vst [vmem:[%s12 + $0x78] sm:$0xff] %v3036
  %3062 = vst [vmem:[%s12 + $0x80] sm:$0xff] %v3037
  %3063 = vst [vmem:[%s12 + $0x88] sm:$0xff] %v3038
  %3064 = vst [vmem:[%s12 + $0x90] sm:$0xff] %v3039
  %3065 = vst [vmem:[%s12 + $0x98] sm:$0xff] %v3040
  %3066 = vst [vmem:[%s12 + $0xa0] sm:$0xff] %v3041
  %3067 = vst [vmem:[%s12 + $0xa8] sm:$0xff] %v3042
  %3068 = vst [vmem:[%s12 + $0xb0] sm:$0xff] %v3043
  %3069 = vst [vmem:[%s12 + $0xb8] sm:$0xff] %v3044
  %3070 = vst [vmem:[%s12 + $0xc0] sm:$0xff] %v3045
  // Predicated region
  $region50: #{mymodel3_forward.1} parent=0 // pred_check
    _
  $region51: #{mymodel3_forward.1} parent=0 // pred_check_branch
    %3072 = sbr.rel (0) target = $region53
  $region52: #{mymodel3_forward.1} parent=0 // pred_region
    _
  $region53: #{mymodel3_forward.1} parent=0 // pred_fallthru
    _
  // Predicated region
  $region54: #{mymodel3_forward.1} parent=0 // pred_check
    _
  $region55: #{mymodel3_forward.1} parent=0 // pred_check_branch
    %3074 = sbr.rel (0) target = $region57
  $region56: #{mymodel3_forward.1} parent=0 // pred_region
    _
  $region57: #{mymodel3_forward.1} parent=0 // pred_fallthru
    _

</llo_original>
